<compile_context>
chip_gen: v6e
topology: v6e:2x2x1
jax: 0.10.0
libtpu: 0.0.40
codegen_flags: <defaults>
</compile_context>

<pallas_src>
import jax
import jax.numpy as jnp
from jax.experimental import pallas as pl
from jax.experimental.pallas import tpu as pltpu


def _round_up(v, m):
    return ((v + m - 1) // m) * m


def _choose_tile_b(batch, desired):
    """Pick the batch-tile (rows per grid step).

    Caps at `desired`, keeps sublane (8) alignment, and keeps the grid >= 2
    steps whenever the batch allows it so dimension_semantics=("parallel",)
    actually shards the batch over v7x's two TensorCores."""
    desired = max(8, _round_up(desired, 8))
    if batch <= 8:
        return 8
    half = _round_up((batch + 1) // 2, 8)
    return max(8, min(desired, half))


def dpg_mlp_kernel(x_ref, y_ref, w_ref, b_ref, out_ref):
    """One batch tile.

      x_ref  : (TB, in_size) f32   state input (feature-unpadded)
      y_ref  : (TB, M)       f32   previous-action input (feature-unpadded)
      w_ref  : (6, D, D)     bf16  packed weights [w1, w2, w3, w4[:H], w4[H:], w5]
      b_ref  : (8, D)        f32   packed biases  [b1, b2, b3, b4, b5(+-1e30 pad mask)]
      out_ref: (TB, M)       f32   softmax action weights (real lanes only)
    """
    bf16 = jnp.bfloat16
    f32 = jnp.float32
    in_size = x_ref.shape[-1]
    m_out = out_ref.shape[-1]

    x = x_ref[...].astype(bf16)          # (TB, in_size)
    y = y_ref[...].astype(bf16)          # (TB, M)

    def dense_full(a_f32, widx, bidx):
        # bf16 operands on the MXU (K = D), fp32 accumulation, fp32 bias add.
        return (jnp.dot(a_f32.astype(bf16), w_ref[widx],
                        preferred_element_type=f32)
                + b_ref[bidx:bidx + 1, :])

    # h1 = tanh(fc1(x)) : contract over the in_size real rows of slot 0.
    z1 = (jnp.dot(x, w_ref[0, :in_size, :], preferred_element_type=f32)
          + b_ref[0:1, :])
    h1 = jnp.tanh(z1)

    # h2 = dropout(tanh(fc2(h1)))  -- dropout == identity (eval mode)
    h2 = jnp.tanh(dense_full(h1, 1, 1))

    # h3 = dropout(tanh(fc3(y))) : contract over the M real rows of slot 2.
    z3 = (jnp.dot(y, w_ref[2, :m_out, :], preferred_element_type=f32)
          + b_ref[2:3, :])
    h3 = jnp.tanh(z3)

    # h4 = cat((h3, h2)); h5 = dropout(tanh(fc4(h4)))
    #   cat((h3, h2)) @ W4  ==  h3 @ W4[:H] + h2 @ W4[H:]   (packed slots 3, 4)
    # TODO(synk): on v6e/v7x a single fused K=2*D dot (lane-concat scratch)
    # would exactly fill the 256x256 MXU; kept split so one kernel serves v5e.
    z4 = (jnp.dot(h3.astype(bf16), w_ref[3], preferred_element_type=f32)
          + jnp.dot(h2.astype(bf16), w_ref[4], preferred_element_type=f32)
          + b_ref[3:4, :])
    h5 = jnp.tanh(z4)

    # logits = fc5(h5); padded lanes carry a -1e30 bias -> exp underflows to 0,
    # so the softmax over the full D lanes equals the softmax over the M real ones.
    logits = dense_full(h5, 5, 4)
    row_max = jnp.max(logits, axis=-1, keepdims=True)
    e = jnp.exp(logits - row_max)
    # Exact f32 normalization so rows sum to 1 to float precision.
    probs = e / jnp.sum(e, axis=-1, keepdims=True)
    out_ref[...] = probs[:, :m_out]


def pack_params(params):
    """Pack (w1,b1,...,w5,b5) into one bf16 weight buffer and one f32 bias buffer.

    Weights are stored as (in_dim, out_dim) (transpose of torch's .weight) and
    zero-padded to (D, D), D = round_up(max(in_size, hidden, M), 128).
    Slot order: [w1, w2, w3, w4[:H], w4[H:], w5].
    Bias rows:  [b1, b2, b3, b4, b5]; padded b5 lanes set to -1e30 (softmax mask).
    """
    (w1, b1, w2, b2, w3, b3, w4, b4, w5, b5) = params
    in_size, H = w1.shape
    M = w5.shape[1]
    D = _round_up(max(in_size, H, M), 128)

    def pad2(w):
        p = jnp.zeros((D, D), jnp.bfloat16)
        return p.at[:w.shape[0], :w.shape[1]].set(w.astype(jnp.bfloat16))

    w_packed = jnp.stack(
        [pad2(w1), pad2(w2), pad2(w3), pad2(w4[:H, :]), pad2(w4[H:, :]), pad2(w5)])

    b_packed = jnp.zeros((8, D), jnp.float32)
    b_packed = b_packed.at[0, :H].set(b1)
    b_packed = b_packed.at[1, :H].set(b2)
    b_packed = b_packed.at[2, :H].set(b3)
    b_packed = b_packed.at[3, :H].set(b4)
    b_packed = b_packed.at[4, :].set(-1e30)     # mask padded logit lanes
    b_packed = b_packed.at[4, :M].set(b5)
    return w_packed, b_packed, (in_size, H, M, D)


def make_dpg_mlp_forward(params, *, tile_b=512):
    """Pack params once, return a jitted forward(x, y).

    x: (B, in_size) or (in_size,);  y: (B, M) or (M,).
    Returns softmax action weights of shape (B, M) (or (M,) for 1-D inputs).
    tile_b is an upper bound on rows per grid step; the actual tile is capped
    at ceil(B/2) so the grid keeps >= 2 steps (v7x dual-TC sharding).
    """
    w_packed, b_packed, (in_size, H, M, D) = pack_params(params)

    @jax.jit
    def forward(x, y):
        squeeze = (x.ndim == 1)
        x2 = jnp.atleast_2d(jnp.asarray(x, jnp.float32))   # (B, in_size)
        y2 = jnp.atleast_2d(jnp.asarray(y, jnp.float32))   # (B, M)
        B = x2.shape[0]

        tb = _choose_tile_b(B, tile_b)
        B_pad = _round_up(B, tb)
        if B_pad != B:
            # Batch-only padding (no feature padding; tiny copy, often elided).
            x2 = jnp.pad(x2, ((0, B_pad - B), (0, 0)))
            y2 = jnp.pad(y2, ((0, B_pad - B), (0, 0)))

        out = pl.pallas_call(
            dpg_mlp_kernel,
            out_shape=jax.ShapeDtypeStruct((B_pad, M), jnp.float32),
            grid_spec=pltpu.PrefetchScalarGridSpec(
                num_scalar_prefetch=0,
                grid=(B_pad // tb,),
                in_specs=[
                    pl.BlockSpec((tb, in_size), lambda i: (i, 0)),   # x tile
                    pl.BlockSpec((tb, M), lambda i: (i, 0)),         # y tile
                    pl.BlockSpec((6, D, D), lambda i: (0, 0, 0)),    # weights (VMEM-resident)
                    pl.BlockSpec((8, D), lambda i: (0, 0)),          # biases (VMEM-resident)
                ],
                out_specs=pl.BlockSpec((tb, M), lambda i: (i, 0)),
            ),
            compiler_params=pltpu.CompilerParams(
                dimension_semantics=("parallel",)),
        )(x2, y2, w_packed, b_packed)

        res = out[:B]                      # batch slice only (no-op when B == B_pad)
        return res[0] if squeeze else res

    return forward


def reference_forward(x, y, params, mimic_bf16=True):
    """Pure-JAX reference of the same math (batched). If mimic_bf16, round the
    dot operands to bf16 exactly like the kernel does."""
    (w1, b1, w2, b2, w3, b3, w4, b4, w5, b5) = params
    H = w1.shape[1]
    cast = (lambda a: a.astype(jnp.bfloat16)) if mimic_bf16 else (lambda a: a)

    def dense(a, w, b):
        return jnp.dot(cast(a), cast(w), preferred_element_type=jnp.float32) + b

    h1 = jnp.tanh(dense(x, w1, b1))
    h2 = jnp.tanh(dense(h1, w2, b2))
    h3 = jnp.tanh(dense(y, w3, b3))
    z4 = (jnp.dot(cast(h3), cast(w4[:H, :]), preferred_element_type=jnp.float32)
          + jnp.dot(cast(h2), cast(w4[H:, :]), preferred_element_type=jnp.float32)
          + b4)
    h5 = jnp.tanh(z4)
    logits = dense(h5, w5, b5)
    return jax.nn.softmax(logits, axis=-1)


def init_params(key, M, L, N, hidden):
    """Deterministic synthetic parameters, shapes matching DPG_MLP.__init__
    (weights stored transposed: (in_dim, out_dim))."""
    in_size = M * L * N
    shapes = [
        ((in_size, hidden), (hidden,)),        # fc1
        ((hidden, hidden), (hidden,)),         # fc2
        ((M, hidden), (hidden,)),              # fc3
        ((2 * hidden, hidden), (hidden,)),     # fc4
        ((hidden, M), (M,)),                   # fc5
    ]
    params = []
    for (w_shape, b_shape) in shapes:
        key, kw, kb = jax.random.split(key, 3)
        bound = 1.0 / jnp.sqrt(w_shape[0])
        params.append(jax.random.uniform(kw, w_shape, jnp.float32, -bound, bound))
        params.append(jax.random.uniform(kb, b_shape, jnp.float32, -bound, bound))
    return tuple(params)


if __name__ == "__main__":
    M, L, N, hidden = 4, 2, 4, 32          # in_size = 32
    B = 256                                 # batch of independent (x, y) pairs

    key = jax.random.PRNGKey(0)
    key, kx, ky, kp = jax.random.split(key, 4)
    x = jax.random.normal(kx, (B, M * L * N), jnp.float32)
    y = jax.random.normal(ky, (B, M), jnp.float32)
    params = init_params(kp, M, L, N, hidden)

    forward = make_dpg_mlp_forward(params, tile_b=512)
    out = jax.block_until_ready(forward(x, y))
    assert out.shape == (B, M)

    # Reference check (same math, same bf16 operand rounding as the kernel).
    ref = reference_forward(x, y, params, mimic_bf16=True)
    assert jnp.allclose(out, ref, atol=5e-3, rtol=5e-3), \
        float(jnp.max(jnp.abs(out - ref)))

    # Softmax rows sum to 1 (exact f32 normalization in-kernel).
    assert jnp.allclose(jnp.sum(out, axis=-1), 1.0, atol=1e-3)

    # Original torch-style single-sample (1-D) API still works and matches.
    out1 = jax.block_until_ready(forward(x[0], y[0]))
    assert out1.shape == (M,)
    assert jnp.allclose(out1, out[0], atol=1e-5)

    print("KERNEL_OK")
</pallas_src>

<mosaic_0001>
module attributes {stable_mosaic.version = 11 : i64} {
  func.func @dpg_mlp_kernel(%arg0: i32, %arg1: memref<128x32xf32, #tpu.memory_space<vmem>>, %arg2: memref<128x4xf32, #tpu.memory_space<vmem>>, %arg3: memref<6x128x128xbf16, #tpu.memory_space<vmem>>, %arg4: memref<8x128xf32, #tpu.memory_space<vmem>>, %arg5: memref<128x4xf32, #tpu.memory_space<vmem>>) attributes {dimension_semantics = [#tpu.dimension_semantics<parallel>], iteration_bounds = array<i64: 2>, scalar_prefetch = 0 : i64, scratch_operands = 0 : i64, tpu.core_type = #tpu.core_type<tc>, window_params = [{transform_indices = @transform_0, window_bounds = array<i64: 128, 32>}, {transform_indices = @transform_1, window_bounds = array<i64: 128, 4>}, {pipeline_mode = #tpu.pipeline_mode<synchronous>, transform_indices = @transform_2, window_bounds = array<i64: 6, 128, 128>}, {pipeline_mode = #tpu.pipeline_mode<synchronous>, transform_indices = @transform_3, window_bounds = array<i64: 8, 128>}, {transform_indices = @transform_4, window_bounds = array<i64: 128, 4>}]} {
    %c0 = arith.constant 0 : index
    %c0_0 = arith.constant 0 : index
    %0 = vector.load %arg1[%c0, %c0_0] : memref<128x32xf32, #tpu.memory_space<vmem>>, vector<128x32xf32>
    %1 = arith.truncf %0 : vector<128x32xf32> to vector<128x32xbf16>
    %c0_1 = arith.constant 0 : index
    %c0_2 = arith.constant 0 : index
    %2 = vector.load %arg2[%c0_1, %c0_2] : memref<128x4xf32, #tpu.memory_space<vmem>>, vector<128x4xf32>
    %3 = arith.truncf %2 : vector<128x4xf32> to vector<128x4xbf16>
    %c0_3 = arith.constant 0 : index
    %c0_4 = arith.constant 0 : index
    %c0_5 = arith.constant 0 : index
    %4 = vector.load %arg3[%c0_3, %c0_4, %c0_5] : memref<6x128x128xbf16, #tpu.memory_space<vmem>>, vector<1x32x128xbf16>
    %5 = vector.shape_cast %4 : vector<1x32x128xbf16> to vector<32x128xbf16>
    %cst = arith.constant dense<0.000000e+00> : vector<128x128xf32>
    %6 = tpu.matmul %1, %5, %cst {dimension_numbers = #tpu.dot_dimension_numbers<[1], [0], [0], [1], [0, 0, 1, 1], [], []>} : vector<128x32xbf16>, vector<32x128xbf16>, vector<128x128xf32> -> vector<128x128xf32>
    %c0_6 = arith.constant 0 : index
    %c0_7 = arith.constant 0 : index
    %7 = vector.load %arg4[%c0_6, %c0_7] : memref<8x128xf32, #tpu.memory_space<vmem>>, vector<1x128xf32>
    %8 = vector.broadcast %7 : vector<1x128xf32> to vector<128x128xf32>
    %9 = arith.addf %6, %8 : vector<128x128xf32>
    %10 = math.tanh %9 : vector<128x128xf32>
    %11 = arith.truncf %10 : vector<128x128xf32> to vector<128x128xbf16>
    %c1 = arith.constant 1 : index
    %c0_8 = arith.constant 0 : index
    %c0_9 = arith.constant 0 : index
    %12 = vector.load %arg3[%c1, %c0_8, %c0_9] : memref<6x128x128xbf16, #tpu.memory_space<vmem>>, vector<1x128x128xbf16>
    %13 = vector.shape_cast %12 : vector<1x128x128xbf16> to vector<128x128xbf16>
    %cst_10 = arith.constant dense<0.000000e+00> : vector<128x128xf32>
    %14 = tpu.matmul %11, %13, %cst_10 {dimension_numbers = #tpu.dot_dimension_numbers<[1], [0], [0], [1], [0, 0, 1, 1], [], []>} : vector<128x128xbf16>, vector<128x128xbf16>, vector<128x128xf32> -> vector<128x128xf32>
    %c1_11 = arith.constant 1 : index
    %c0_12 = arith.constant 0 : index
    %15 = vector.load %arg4[%c1_11, %c0_12] : memref<8x128xf32, #tpu.memory_space<vmem>>, vector<1x128xf32>
    %16 = vector.broadcast %15 : vector<1x128xf32> to vector<128x128xf32>
    %17 = arith.addf %14, %16 : vector<128x128xf32>
    %18 = math.tanh %17 : vector<128x128xf32>
    %c2 = arith.constant 2 : index
    %c0_13 = arith.constant 0 : index
    %c0_14 = arith.constant 0 : index
    %19 = vector.load %arg3[%c2, %c0_13, %c0_14] : memref<6x128x128xbf16, #tpu.memory_space<vmem>>, vector<1x4x128xbf16>
    %20 = vector.shape_cast %19 : vector<1x4x128xbf16> to vector<4x128xbf16>
    %cst_15 = arith.constant dense<0.000000e+00> : vector<128x128xf32>
    %21 = tpu.matmul %3, %20, %cst_15 {dimension_numbers = #tpu.dot_dimension_numbers<[1], [0], [0], [1], [0, 0, 1, 1], [], []>} : vector<128x4xbf16>, vector<4x128xbf16>, vector<128x128xf32> -> vector<128x128xf32>
    %c2_16 = arith.constant 2 : index
    %c0_17 = arith.constant 0 : index
    %22 = vector.load %arg4[%c2_16, %c0_17] : memref<8x128xf32, #tpu.memory_space<vmem>>, vector<1x128xf32>
    %23 = vector.broadcast %22 : vector<1x128xf32> to vector<128x128xf32>
    %24 = arith.addf %21, %23 : vector<128x128xf32>
    %25 = math.tanh %24 : vector<128x128xf32>
    %26 = arith.truncf %25 : vector<128x128xf32> to vector<128x128xbf16>
    %c3 = arith.constant 3 : index
    %c0_18 = arith.constant 0 : index
    %c0_19 = arith.constant 0 : index
    %27 = vector.load %arg3[%c3, %c0_18, %c0_19] : memref<6x128x128xbf16, #tpu.memory_space<vmem>>, vector<1x128x128xbf16>
    %28 = vector.shape_cast %27 : vector<1x128x128xbf16> to vector<128x128xbf16>
    %cst_20 = arith.constant dense<0.000000e+00> : vector<128x128xf32>
    %29 = tpu.matmul %26, %28, %cst_20 {dimension_numbers = #tpu.dot_dimension_numbers<[1], [0], [0], [1], [0, 0, 1, 1], [], []>} : vector<128x128xbf16>, vector<128x128xbf16>, vector<128x128xf32> -> vector<128x128xf32>
    %30 = arith.truncf %18 : vector<128x128xf32> to vector<128x128xbf16>
    %c4 = arith.constant 4 : index
    %c0_21 = arith.constant 0 : index
    %c0_22 = arith.constant 0 : index
    %31 = vector.load %arg3[%c4, %c0_21, %c0_22] : memref<6x128x128xbf16, #tpu.memory_space<vmem>>, vector<1x128x128xbf16>
    %32 = vector.shape_cast %31 : vector<1x128x128xbf16> to vector<128x128xbf16>
    %cst_23 = arith.constant dense<0.000000e+00> : vector<128x128xf32>
    %33 = tpu.matmul %30, %32, %cst_23 {dimension_numbers = #tpu.dot_dimension_numbers<[1], [0], [0], [1], [0, 0, 1, 1], [], []>} : vector<128x128xbf16>, vector<128x128xbf16>, vector<128x128xf32> -> vector<128x128xf32>
    %34 = arith.addf %29, %33 : vector<128x128xf32>
    %c3_24 = arith.constant 3 : index
    %c0_25 = arith.constant 0 : index
    %35 = vector.load %arg4[%c3_24, %c0_25] : memref<8x128xf32, #tpu.memory_space<vmem>>, vector<1x128xf32>
    %36 = vector.broadcast %35 : vector<1x128xf32> to vector<128x128xf32>
    %37 = arith.addf %34, %36 : vector<128x128xf32>
    %38 = math.tanh %37 : vector<128x128xf32>
    %39 = arith.truncf %38 : vector<128x128xf32> to vector<128x128xbf16>
    %c5 = arith.constant 5 : index
    %c0_26 = arith.constant 0 : index
    %c0_27 = arith.constant 0 : index
    %40 = vector.load %arg3[%c5, %c0_26, %c0_27] : memref<6x128x128xbf16, #tpu.memory_space<vmem>>, vector<1x128x128xbf16>
    %41 = vector.shape_cast %40 : vector<1x128x128xbf16> to vector<128x128xbf16>
    %cst_28 = arith.constant dense<0.000000e+00> : vector<128x128xf32>
    %42 = tpu.matmul %39, %41, %cst_28 {dimension_numbers = #tpu.dot_dimension_numbers<[1], [0], [0], [1], [0, 0, 1, 1], [], []>} : vector<128x128xbf16>, vector<128x128xbf16>, vector<128x128xf32> -> vector<128x128xf32>
    %c4_29 = arith.constant 4 : index
    %c0_30 = arith.constant 0 : index
    %43 = vector.load %arg4[%c4_29, %c0_30] : memref<8x128xf32, #tpu.memory_space<vmem>>, vector<1x128xf32>
    %44 = vector.broadcast %43 : vector<1x128xf32> to vector<128x128xf32>
    %45 = arith.addf %42, %44 : vector<128x128xf32>
    %cst_31 = arith.constant dense<0xFF800000> : vector<128xf32>
    %46 = vector.multi_reduction <maximumf>, %45, %cst_31 [1] : vector<128x128xf32> to vector<128xf32>
    %47 = vector.shape_cast %46 : vector<128xf32> to vector<128x1xf32>
    %48 = vector.broadcast %47 : vector<128x1xf32> to vector<128x128xf32>
    %49 = arith.subf %45, %48 : vector<128x128xf32>
    %50 = math.exp %49 : vector<128x128xf32>
    %cst_32 = arith.constant dense<0.000000e+00> : vector<128xf32>
    %51 = vector.multi_reduction <add>, %50, %cst_32 [1] : vector<128x128xf32> to vector<128xf32>
    %52 = vector.shape_cast %51 : vector<128xf32> to vector<128x1xf32>
    %53 = vector.broadcast %52 : vector<128x1xf32> to vector<128x128xf32>
    %54 = arith.divf %50, %53 : vector<128x128xf32>
    %55 = vector.extract_strided_slice %54 {offsets = [0, 0], sizes = [128, 4], strides = [1, 1]} : vector<128x128xf32> to vector<128x4xf32>
    %c0_33 = arith.constant 0 : index
    %c0_34 = arith.constant 0 : index
    %56 = vector.load %arg5[%c0_33, %c0_34] : memref<128x4xf32, #tpu.memory_space<vmem>>, vector<128x4xf32>
    tpu.vector_store %arg5[%c0_33, %c0_34], %55 {strides = array<i32>} : memref<128x4xf32, #tpu.memory_space<vmem>>, vector<128x4xf32>,
    return
  }
  func.func @transform_0(%arg0: i32) -> (i32, i32) {
    %c0_i32 = arith.constant 0 : i32
    %c0_i32_0 = arith.constant 0 : i32
    return %arg0, %c0_i32 : i32, i32
  }
  func.func @transform_1(%arg0: i32) -> (i32, i32) {
    %c0_i32 = arith.constant 0 : i32
    %c0_i32_0 = arith.constant 0 : i32
    return %arg0, %c0_i32 : i32, i32
  }
  func.func @transform_2(%arg0: i32) -> (i32, i32, i32) {
    %c0_i32 = arith.constant 0 : i32
    %c0_i32_0 = arith.constant 0 : i32
    %c0_i32_1 = arith.constant 0 : i32
    %c0_i32_2 = arith.constant 0 : i32
    return %c0_i32, %c0_i32_0, %c0_i32_1 : i32, i32, i32
  }
  func.func @transform_3(%arg0: i32) -> (i32, i32) {
    %c0_i32 = arith.constant 0 : i32
    %c0_i32_0 = arith.constant 0 : i32
    %c0_i32_1 = arith.constant 0 : i32
    return %c0_i32, %c0_i32_0 : i32, i32
  }
  func.func @transform_4(%arg0: i32) -> (i32, i32) {
    %c0_i32 = arith.constant 0 : i32
    %c0_i32_0 = arith.constant 0 : i32
    return %arg0, %c0_i32 : i32, i32
  }
}

</mosaic_0001>

<llo_original>
// kernel: forward.1
$region0: #{forward.1}
  #allocation0 [shape = 'u32[]', space=smem, size = 0x4, offset = 0x4, fixed_abs, tag = 'smem constant byte address 0x4 - core index']
  #allocation1 [shape = 'u32[144,128]{1,0:T(1,128)}', space=vmem, size = 0x12000, scoped, tag = 'internal scratch']
  %s0 = inlined_call_operand.vmem [shape: f32[256,32], index: 0, kind: input, shape index: {}]
  %s1 = inlined_call_operand.vmem [shape: f32[256,4], index: 1, kind: input, shape index: {}]
  %s2 = inlined_call_operand.vmem [shape: bf16[6,128,128], index: 2, kind: input, shape index: {}]
  %s3 = inlined_call_operand.vmem [shape: f32[8,128], index: 3, kind: input, shape index: {}]
  %s4 = inlined_call_operand.vmem [shape: f32[256,4], index: 4, kind: output, shape index: {}]
  %s5 = sld [smem:[#allocation0]]
  $region49: #{forward.1} parent=0
    _
  %s7 = ssub.s32 1, %s5
  %s8 = scalar_select 0, %s7, %s5
  loop: start=0, step=1, limit=4
  $region2: #{forward.1} parent=0 // loop_pre_header
    _
  $region3: #{forward.1} parent=0 // loop_header
    %s10 = sphi 0, %s14
    %p11 = scmp.ge.s32.totalorder %s10, 4
    %s20 = sphi 0, %s22
    %s23 = sphi 0, %s20
    %s24 = sphi 0, %s23
    %s40 = sphi 0, %s24
    %s46 = sphi 0, %s48
    %s49 = sphi 0, %s46
    %s50 = sphi 0, %s49
    %s66 = sphi 0, %s50
    %s70 = sphi 0, %s70
    %s72 = sphi 0, %s70
    %s73 = sphi 0, %s72
    %s87 = sphi 0, %s73
    %s91 = sphi 0, %s91
    %s93 = sphi 0, %s91
    %s94 = sphi 0, %s93
    %s108 = sphi 0, %s94
    %s114 = sphi 0, %s116
    %s117 = sphi 0, %s114
    %s118 = sphi 0, %s117
    %s134 = sphi 0, %s118
  $region4: #{forward.1} parent=0 // loop_header_branch
    %13 = sbr.rel (%p11) target = $region8
  $region5: #{forward.1} parent=0 // loop_body
    %s15 = ssub.s32 %s10, 1
    %s16 = ssub.s32 %s10, 2
    %s17 = sadd.s32 %s10, 1
    %s18 = ssub.s32 %s10, %s17
    %p19 = scmp.eq.s32.totalorder %s18, 0
    %s21 = sadd.s32 %s20, 1
    %s22 = scalar_select %p19, %s20, %s21
    %p25 = pneg %p19
    %p26 = scmp.eq.s32.totalorder %s10, 1
    %p27 = por %p25, %p26
    %p28 = scmp.ne.s32.totalorder %s20, %s23
    %p29 = scmp.eq.s32.totalorder %s10, 0
    %p30 = por %p28, %p29
    %p31 = scmp.ne.s32.totalorder %s20, %s23
    %p32 = scmp.eq.s32.totalorder %s15, 1
    %p33 = por %p31, %p32
    %p34 = scmp.ne.s32.totalorder %s23, %s24
    %p35 = scmp.eq.s32.totalorder %s15, 0
    %p36 = por %p34, %p35
    %p37 = scmp.ne.s32.totalorder %s23, %s24
    %p38 = scmp.eq.s32.totalorder %s16, 1
    %p39 = por %p37, %p38
    %p41 = scmp.ne.s32.totalorder %s24, %s40
    %p42 = scmp.eq.s32.totalorder %s16, 0
    %p43 = por %p41, %p42
    %s44 = ssub.s32 %s10, %s17
    %p45 = scmp.eq.s32.totalorder %s44, 0
    %s47 = sadd.s32 %s46, 1
    %s48 = scalar_select %p45, %s46, %s47
    %p51 = pneg %p45
    %p52 = scmp.eq.s32.totalorder %s10, 1
    %p53 = por %p51, %p52
    %p54 = scmp.ne.s32.totalorder %s46, %s49
    %p55 = scmp.eq.s32.totalorder %s10, 0
    %p56 = por %p54, %p55
    %p57 = scmp.ne.s32.totalorder %s46, %s49
    %p58 = scmp.eq.s32.totalorder %s15, 1
    %p59 = por %p57, %p58
    %p60 = scmp.ne.s32.totalorder %s49, %s50
    %p61 = scmp.eq.s32.totalorder %s15, 0
    %p62 = por %p60, %p61
    %p63 = scmp.ne.s32.totalorder %s49, %s50
    %p64 = scmp.eq.s32.totalorder %s16, 1
    %p65 = por %p63, %p64
    %p67 = scmp.ne.s32.totalorder %s50, %s66
    %p68 = scmp.eq.s32.totalorder %s16, 0
    %p69 = por %p67, %p68
    %s71 = sadd.s32 %s70, 1
    %p74 = scmp.eq.s32.totalorder %s10, 1
    %p75 = scmp.ne.s32.totalorder %s70, %s72
    %p76 = scmp.eq.s32.totalorder %s10, 0
    %p77 = por %p75, %p76
    %p78 = scmp.ne.s32.totalorder %s70, %s72
    %p79 = scmp.eq.s32.totalorder %s15, 1
    %p80 = por %p78, %p79
    %p81 = scmp.ne.s32.totalorder %s72, %s73
    %p82 = scmp.eq.s32.totalorder %s15, 0
    %p83 = por %p81, %p82
    %p84 = scmp.ne.s32.totalorder %s72, %s73
    %p85 = scmp.eq.s32.totalorder %s16, 1
    %p86 = por %p84, %p85
    %p88 = scmp.ne.s32.totalorder %s73, %s87
    %p89 = scmp.eq.s32.totalorder %s16, 0
    %p90 = por %p88, %p89
    %s92 = sadd.s32 %s91, 1
    %p95 = scmp.eq.s32.totalorder %s10, 1
    %p96 = scmp.ne.s32.totalorder %s91, %s93
    %p97 = scmp.eq.s32.totalorder %s10, 0
    %p98 = por %p96, %p97
    %p99 = scmp.ne.s32.totalorder %s91, %s93
    %p100 = scmp.eq.s32.totalorder %s15, 1
    %p101 = por %p99, %p100
    %p102 = scmp.ne.s32.totalorder %s93, %s94
    %p103 = scmp.eq.s32.totalorder %s15, 0
    %p104 = por %p102, %p103
    %p105 = scmp.ne.s32.totalorder %s93, %s94
    %p106 = scmp.eq.s32.totalorder %s16, 1
    %p107 = por %p105, %p106
    %p109 = scmp.ne.s32.totalorder %s94, %s108
    %p110 = scmp.eq.s32.totalorder %s16, 0
    %p111 = por %p109, %p110
    %s112 = ssub.s32 %s10, %s17
    %p113 = scmp.eq.s32.totalorder %s112, 0
    %s115 = sadd.s32 %s114, 1
    %s116 = scalar_select %p113, %s114, %s115
    %p119 = pneg %p113
    %p120 = scmp.eq.s32.totalorder %s10, 1
    %p121 = por %p119, %p120
    %p122 = scmp.ne.s32.totalorder %s114, %s117
    %p123 = scmp.eq.s32.totalorder %s10, 0
    %p124 = por %p122, %p123
    %p125 = scmp.ne.s32.totalorder %s114, %s117
    %p126 = scmp.eq.s32.totalorder %s15, 1
    %p127 = por %p125, %p126
    %p128 = scmp.ne.s32.totalorder %s117, %s118
    %p129 = scmp.eq.s32.totalorder %s15, 0
    %p130 = por %p128, %p129
    %p131 = scmp.ne.s32.totalorder %s117, %s118
    %p132 = scmp.eq.s32.totalorder %s16, 1
    %p133 = por %p131, %p132
    %p135 = scmp.ne.s32.totalorder %s118, %s134
    %p136 = scmp.eq.s32.totalorder %s16, 0
    %p137 = por %p135, %p136
    %p138 = scmp.le.s32.totalorder 1, %s10
    %p139 = scmp.lt.s32.totalorder %s10, 3
    %p140 = pnand %p138, %p139
    %p141 = pneg %p140
    // Predicated region
    $region9: #{forward.1} parent=5 // pred_check
      _
    $region10: #{forward.1} parent=5 // pred_check_branch
      %143 = sbr.rel (%p140) target = $region12
    $region11: #{forward.1} parent=5 // pred_region
      %s144 = ssub.s32 %s10, 1
      // Predicated region
      $region13: #{forward.1} parent=11 // pred_check
        %p145 = pneg %p83
      $region14: #{forward.1} parent=11 // pred_check_branch
        %147 = sbr.rel (%p145) target = $region16
      $region15: #{forward.1} parent=11 // pred_region
        _
      $region16: #{forward.1} parent=11 // pred_fallthru
        _
      // Predicated region
      $region17: #{forward.1} parent=11 // pred_check
        %p148 = pneg %p104
      $region18: #{forward.1} parent=11 // pred_check_branch
        %150 = sbr.rel (%p148) target = $region20
      $region19: #{forward.1} parent=11 // pred_region
        _
      $region20: #{forward.1} parent=11 // pred_fallthru
        _
    $region12: #{forward.1} parent=5 // pred_fallthru
      _
    %p151 = scmp.lt.s32.totalorder %s10, 2
    // Predicated region
    $region21: #{forward.1} parent=5 // pred_check
      %p152 = pneg %p151
    $region22: #{forward.1} parent=5 // pred_check_branch
      %154 = sbr.rel (%p152) target = $region24
    $region23: #{forward.1} parent=5 // pred_region
      // Predicated region
      $region25: #{forward.1} parent=23 // pred_check
        %p155 = pneg %p30
      $region26: #{forward.1} parent=23 // pred_check_branch
        %157 = sbr.rel (%p155) target = $region28
      $region27: #{forward.1} parent=23 // pred_region
        %s158 = smul.u32 16, %s10
        %p159 = scmp.lt.s32.totalorder %s158, 31
        %s160 = scalar_select %p159, %s158, 31
        %s161 = smul.addr %s160, 8
        %s162 = scalar_lea.vmem %s0, %s161
        %s163 = smul.u32 16, %s10
      $region28: #{forward.1} parent=23 // pred_fallthru
        _
      // Predicated region
      $region29: #{forward.1} parent=23 // pred_check
        %p164 = pneg %p56
      $region30: #{forward.1} parent=23 // pred_check_branch
        %166 = sbr.rel (%p164) target = $region32
      $region31: #{forward.1} parent=23 // pred_region
        %s167 = smul.u32 16, %s10
        %p168 = scmp.lt.s32.totalorder %s167, 31
        %s169 = scalar_select %p168, %s167, 31
        %s170 = smul.addr %s169, 8
        %s171 = scalar_lea.vmem %s1, %s170
        %s172 = smul.u32 16, %s10
      $region32: #{forward.1} parent=23 // pred_fallthru
        _
    $region24: #{forward.1} parent=5 // pred_fallthru
      _
    %p173 = scmp.le.s32.totalorder 1, %s10
    %p174 = scmp.lt.s32.totalorder %s10, 3
    %p175 = pnand %p173, %p174
    %p176 = pneg %p175
    // Predicated region
    $region33: #{forward.1} parent=5 // pred_check
      _
    $region34: #{forward.1} parent=5 // pred_check_branch
      %178 = sbr.rel (%p175) target = $region36
    $region35: #{forward.1} parent=5 // pred_region
      %s179 = ssub.s32 %s10, 1
      %s180 = smul.u32 16, %s15
      %p181 = scmp.lt.s32.totalorder %s180, 31
      %s182 = scalar_select %p181, %s180, 31
      %s183 = smul.addr %s182, 8
      %s184 = scalar_lea.vmem %s0, %s183
      %p185 = pneg %p36
      %p186 = pneg %p33
      %s187 = smul.u32 16, %s15
      %p188 = scmp.lt.s32.totalorder %s187, 31
      %s189 = scalar_select %p188, %s187, 31
      %s190 = smul.addr %s189, 8
      %s191 = scalar_lea.vmem %s1, %s190
      %p192 = pneg %p62
      %p193 = pneg %p59
      %p194 = pneg %p83
      %p195 = pneg %p80
      %p196 = pneg %p104
      %p197 = pneg %p101
      %p198 = pneg %p130
      %p199 = pneg %p127
      %s200 = smul.u32 16, %s15
      %p201 = scmp.lt.s32.totalorder %s200, 31
      %s202 = scalar_select %p201, %s200, 31
      %s203 = smul.addr %s202, 8
      %s204 = scalar_lea.vmem %s4, %s203
      %s205 = smul.u32 16, %s15
      %p206 = scmp.lt.s32.totalorder %s205, 31
      %s207 = scalar_select %p206, %s205, 31
      %s208 = smul.addr %s207, 8
      %s209 = scalar_lea.vmem %s0, %s208
      %s210 = smul.u32 16, %s15
      %s211 = smul.u32 16, %s15
      %p212 = scmp.lt.s32.totalorder %s211, 31
      %s213 = scalar_select %p212, %s211, 31
      %s214 = smul.addr %s213, 8
      %s215 = scalar_lea.vmem %s1, %s214
      %s216 = smul.u32 16, %s15
      %s217 = smul.u32 16, %s15
      %p218 = scmp.lt.s32.totalorder %s217, 31
      %s219 = scalar_select %p218, %s217, 31
      %s220 = smul.addr %s219, 8
      %s221 = scalar_lea.vmem %s4, %s220
      %s222 = smul.u32 16, %s15
      %v224 = vld [vmem:[%s209] sm:$0xff]
      %v225 = vld [vmem:[%s209 + $0x8] sm:$0xff]
      %v226 = vld [vmem:[%s209 + $0x10] sm:$0xff]
      %v227 = vld [vmem:[%s209 + $0x18] sm:$0xff]
      %v228 = vld [vmem:[%s209 + $0x20] sm:$0xff]
      %v229 = vld [vmem:[%s209 + $0x28] sm:$0xff]
      %v230 = vld [vmem:[%s209 + $0x30] sm:$0xff]
      %v231 = vld [vmem:[%s209 + $0x38] sm:$0xff]
      %v232 = vld [vmem:[%s209 + $0x40] sm:$0xff]
      %v233 = vld [vmem:[%s209 + $0x48] sm:$0xff]
      %v234 = vld [vmem:[%s209 + $0x50] sm:$0xff]
      %v235 = vld [vmem:[%s209 + $0x58] sm:$0xff]
      %v236 = vld [vmem:[%s209 + $0x60] sm:$0xff]
      %v237 = vld [vmem:[%s209 + $0x68] sm:$0xff]
      %v238 = vld [vmem:[%s209 + $0x70] sm:$0xff]
      %v239 = vld [vmem:[%s209 + $0x78] sm:$0xff]
      %v240 = vpack.c.bf16 %v225, %v224
      %v241 = vpack.c.bf16 %v227, %v226
      %v242 = vpack.c.bf16 %v229, %v228
      %v243 = vpack.c.bf16 %v231, %v230
      %v244 = vpack.c.bf16 %v233, %v232
      %v245 = vpack.c.bf16 %v235, %v234
      %v246 = vpack.c.bf16 %v237, %v236
      %v247 = vpack.c.bf16 %v239, %v238
      %v248 = vld [vmem:[%s215] sm:$0xff]
      %v249 = vld [vmem:[%s215 + $0x8] sm:$0xff]
      %v250 = vld [vmem:[%s215 + $0x10] sm:$0xff]
      %v251 = vld [vmem:[%s215 + $0x18] sm:$0xff]
      %v252 = vld [vmem:[%s215 + $0x20] sm:$0xff]
      %v253 = vld [vmem:[%s215 + $0x28] sm:$0xff]
      %v254 = vld [vmem:[%s215 + $0x30] sm:$0xff]
      %v255 = vld [vmem:[%s215 + $0x38] sm:$0xff]
      %v256 = vld [vmem:[%s215 + $0x40] sm:$0xff]
      %v257 = vld [vmem:[%s215 + $0x48] sm:$0xff]
      %v258 = vld [vmem:[%s215 + $0x50] sm:$0xff]
      %v259 = vld [vmem:[%s215 + $0x58] sm:$0xff]
      %v260 = vld [vmem:[%s215 + $0x60] sm:$0xff]
      %v261 = vld [vmem:[%s215 + $0x68] sm:$0xff]
      %v262 = vld [vmem:[%s215 + $0x70] sm:$0xff]
      %v263 = vld [vmem:[%s215 + $0x78] sm:$0xff]
      %v264 = vpack.c.bf16 %v249, %v248
      %v265 = vpack.c.bf16 %v251, %v250
      %v266 = vpack.c.bf16 %v253, %v252
      %v267 = vpack.c.bf16 %v255, %v254
      %v268 = vpack.c.bf16 %v257, %v256
      %v269 = vpack.c.bf16 %v259, %v258
      %v270 = vpack.c.bf16 %v261, %v260
      %v271 = vpack.c.bf16 %v263, %v262
      %v272 = vld [vmem:[%s2] sm:$0xf]
      %v273 = vld [vmem:[%s2 + $0x4] sm:$0xf]
      %v274 = vld [vmem:[%s2 + $0x8] sm:$0xf]
      %v275 = vld [vmem:[%s2 + $0xc] sm:$0xf]
      %v276 = vld [vmem:[%s3] sm:$0x1]
      %v277 = vlaneseq
      %v278 = vshrl.u32 %v277, 7
      %v279 = vsub.s32 0, %v278
      %v280 = vrot.slane %v276, %v279
      %v285 = vunpack.c.l.b16 %v272
      %v286 = vunpack.c.l.b16 %v273
      %v287 = vunpack.c.l.b16 %v274
      %v288 = vunpack.c.l.b16 %v275
      %v289 = vpack.c.b16 %v286, %v285
      %v290 = vpack.c.b16 %v288, %v287
      %vm293 = vcmask 261120
      %v295 = vsel %vm293, %v240, 0
      %v298 = vsel %vm293, %v241, 0
      %v301 = vsel %vm293, %v242, 0
      %v304 = vsel %vm293, %v243, 0
      %v307 = vsel %vm293, %v244, 0
      %v310 = vsel %vm293, %v245, 0
      %v313 = vsel %vm293, %v246, 0
      %v316 = vsel %vm293, %v247, 0
      %318 = vmatprep.subr.bf16.mxu0 0
      %319 = vmatpush1.bf16.msra.mxu0 0
      %320 = vmatprep.subr.bf16.mxu0 0
      %321 = vmatpush1.bf16.msra.mxu0 0
      %322 = vmatprep.subr.bf16.mxu0 0
      %323 = vmatpush1.bf16.msra.mxu0 0
      %324 = vmatprep.subr.bf16.mxu0 0
      %325 = vmatpush1.bf16.msra.mxu0 0
      %326 = vmatprep.subr.bf16.mxu0 0
      %327 = vmatpush1.bf16.msra.mxu0 0
      %328 = vmatprep.subr.bf16.mxu0 0
      %329 = vmatpush1.bf16.msra.mxu0 0
      %330 = vmatprep.subr.bf16.mxu0 0
      %331 = vmatpush1.bf16.msra.mxu0 %v290
      %332 = vmatprep.subr.bf16.mxu0 0
      %333 = vmatpush1.bf16.msra.mxu0 %v289
      %334 = vmatprep.subr.bf16.mxu0 0
      %335 = vmatpush2.bf16.msra.mxu0 0
      %336 = vmatprep.subr.bf16.mxu0 0
      %337 = vmatpush2.bf16.msra.mxu0 0
      %338 = vmatprep.subr.bf16.mxu0 0
      %339 = vmatpush2.bf16.msra.mxu0 0
      %340 = vmatprep.subr.bf16.mxu0 0
      %341 = vmatpush2.bf16.msra.mxu0 0
      %342 = vmatprep.subr.bf16.mxu0 0
      %343 = vmatpush2.bf16.msra.mxu0 0
      %344 = vmatprep.subr.bf16.mxu0 0
      %345 = vmatpush2.bf16.msra.mxu0 0
      %346 = vmatprep.subr.bf16.mxu0 0
      %347 = vmatpush2.bf16.msra.mxu0 0
      %348 = vmatprep.subr.bf16.mxu0 0
      %349 = vmatpush2.bf16.msra.mxu0 0
      %350 = vmatprep.mubr.bf16.mxu0 0
      %351 = vmatmul.mubr.bf16.gmra.mxu0 %v295
      %v352 = vpop.f32.mrf.mxu0
      %v353 = vadd.f32 %v280, %v352
      %v354 = vpop.f32.mrf.mxu0
      %v355 = vpop.f32.mrf.mxu0
      %v356 = vadd.f32 %v280, %v355
      %v357 = vpop.f32.mrf.mxu0
      %358 = vmatprep.mubr.bf16.mxu0 0
      %359 = vmatmul.mubr.bf16.gmra.mxu0 %v298
      %v360 = vpop.f32.mrf.mxu0
      %v361 = vadd.f32 %v280, %v360
      %v362 = vpop.f32.mrf.mxu0
      %v363 = vpop.f32.mrf.mxu0
      %v364 = vadd.f32 %v280, %v363
      %v365 = vpop.f32.mrf.mxu0
      %366 = vmatprep.mubr.bf16.mxu0 0
      %367 = vmatmul.mubr.bf16.gmra.mxu0 %v301
      %v368 = vpop.f32.mrf.mxu0
      %v369 = vadd.f32 %v280, %v368
      %v370 = vpop.f32.mrf.mxu0
      %v371 = vpop.f32.mrf.mxu0
      %v372 = vadd.f32 %v280, %v371
      %v373 = vpop.f32.mrf.mxu0
      %374 = vmatprep.mubr.bf16.mxu0 0
      %375 = vmatmul.mubr.bf16.gmra.mxu0 %v304
      %v376 = vpop.f32.mrf.mxu0
      %v377 = vadd.f32 %v280, %v376
      %v378 = vpop.f32.mrf.mxu0
      %v379 = vpop.f32.mrf.mxu0
      %v380 = vadd.f32 %v280, %v379
      %v381 = vpop.f32.mrf.mxu0
      %382 = vmatprep.mubr.bf16.mxu0 0
      %383 = vmatmul.mubr.bf16.gmra.mxu0 %v307
      %v384 = vpop.f32.mrf.mxu0
      %v385 = vadd.f32 %v280, %v384
      %v386 = vpop.f32.mrf.mxu0
      %v387 = vpop.f32.mrf.mxu0
      %v388 = vadd.f32 %v280, %v387
      %v389 = vpop.f32.mrf.mxu0
      %390 = vmatprep.mubr.bf16.mxu0 0
      %391 = vmatmul.mubr.bf16.gmra.mxu0 %v310
      %v392 = vpop.f32.mrf.mxu0
      %v393 = vadd.f32 %v280, %v392
      %v394 = vpop.f32.mrf.mxu0
      %v395 = vpop.f32.mrf.mxu0
      %v396 = vadd.f32 %v280, %v395
      %v397 = vpop.f32.mrf.mxu0
      %398 = vmatprep.mubr.bf16.mxu0 0
      %399 = vmatmul.mubr.bf16.gmra.mxu0 %v313
      %v400 = vpop.f32.mrf.mxu0
      %v401 = vadd.f32 %v280, %v400
      %v402 = vpop.f32.mrf.mxu0
      %v403 = vpop.f32.mrf.mxu0
      %v404 = vadd.f32 %v280, %v403
      %v405 = vpop.f32.mrf.mxu0
      %406 = vmatprep.mubr.bf16.mxu0 0
      %407 = vmatmul.mubr.bf16.gmra.mxu0 %v316
      %v408 = vpop.f32.mrf.mxu0
      %v409 = vadd.f32 %v280, %v408
      %v410 = vpop.f32.mrf.mxu0
      %v411 = vpop.f32.mrf.mxu0
      %v412 = vadd.f32 %v280, %v411
      %v413 = vpop.f32.mrf.mxu0
      %414 = vdwg.mxu0
      %v415 = vtanh.pop %v353
      %v416 = vtanh.pop %v356
      %v417 = vtanh.pop %v361
      %v418 = vtanh.pop %v364
      %v419 = vtanh.pop %v369
      %v420 = vtanh.pop %v372
      %v421 = vtanh.pop %v377
      %v422 = vtanh.pop %v380
      %v423 = vtanh.pop %v385
      %v424 = vtanh.pop %v388
      %v425 = vtanh.pop %v393
      %v426 = vtanh.pop %v396
      %v427 = vtanh.pop %v401
      %v428 = vtanh.pop %v404
      %v429 = vtanh.pop %v409
      %v430 = vtanh.pop %v412
      %v431 = vpack.c.bf16 %v416, %v415
      %v432 = vpack.c.bf16 %v418, %v417
      %v433 = vpack.c.bf16 %v420, %v419
      %v434 = vpack.c.bf16 %v422, %v421
      %v435 = vpack.c.bf16 %v424, %v423
      %v436 = vpack.c.bf16 %v426, %v425
      %v437 = vpack.c.bf16 %v428, %v427
      %v438 = vpack.c.bf16 %v430, %v429
      %s439 = scalar_lea.vmem %s2, 64
      %v440 = vld [vmem:[%s439] sm:$0xf]
      %v441 = vld [vmem:[%s439 + $0x4] sm:$0xf]
      %v442 = vld [vmem:[%s439 + $0x8] sm:$0xf]
      %v443 = vld [vmem:[%s439 + $0xc] sm:$0xf]
      %v444 = vld [vmem:[%s439 + $0x10] sm:$0xf]
      %v445 = vld [vmem:[%s439 + $0x14] sm:$0xf]
      %v446 = vld [vmem:[%s439 + $0x18] sm:$0xf]
      %v447 = vld [vmem:[%s439 + $0x1c] sm:$0xf]
      %v448 = vld [vmem:[%s439 + $0x20] sm:$0xf]
      %v449 = vld [vmem:[%s439 + $0x24] sm:$0xf]
      %v450 = vld [vmem:[%s439 + $0x28] sm:$0xf]
      %v451 = vld [vmem:[%s439 + $0x2c] sm:$0xf]
      %v452 = vld [vmem:[%s439 + $0x30] sm:$0xf]
      %v453 = vld [vmem:[%s439 + $0x34] sm:$0xf]
      %v454 = vld [vmem:[%s439 + $0x38] sm:$0xf]
      %v455 = vld [vmem:[%s439 + $0x3c] sm:$0xf]
      %v456 = vld [vmem:[%s3 + $0x1] sm:$0x1]
      %v457 = vlaneseq
      %v458 = vshrl.u32 %v457, 7
      %v459 = vsub.s32 0, %v458
      %v460 = vrot.slane %v456, %v459
      %v477 = vunpack.c.l.b16 %v440
      %v478 = vunpack.c.l.b16 %v441
      %v479 = vunpack.c.l.b16 %v442
      %v480 = vunpack.c.l.b16 %v443
      %v481 = vunpack.c.l.b16 %v444
      %v482 = vunpack.c.l.b16 %v445
      %v483 = vunpack.c.l.b16 %v446
      %v484 = vunpack.c.l.b16 %v447
      %v485 = vunpack.c.l.b16 %v448
      %v486 = vunpack.c.l.b16 %v449
      %v487 = vunpack.c.l.b16 %v450
      %v488 = vunpack.c.l.b16 %v451
      %v489 = vunpack.c.l.b16 %v452
      %v490 = vunpack.c.l.b16 %v453
      %v491 = vunpack.c.l.b16 %v454
      %v492 = vunpack.c.l.b16 %v455
      %v493 = vpack.c.b16 %v478, %v477
      %v494 = vpack.c.b16 %v480, %v479
      %v495 = vpack.c.b16 %v482, %v481
      %v496 = vpack.c.b16 %v484, %v483
      %v497 = vpack.c.b16 %v486, %v485
      %v498 = vpack.c.b16 %v488, %v487
      %v499 = vpack.c.b16 %v490, %v489
      %v500 = vpack.c.b16 %v492, %v491
      %509 = vmatprep.subr.bf16.mxu0 0
      %510 = vmatpush1.bf16.msra.mxu0 %v500
      %511 = vmatprep.subr.bf16.mxu0 0
      %512 = vmatpush1.bf16.msra.mxu0 %v499
      %513 = vmatprep.subr.bf16.mxu0 0
      %514 = vmatpush1.bf16.msra.mxu0 %v498
      %515 = vmatprep.subr.bf16.mxu0 0
      %516 = vmatpush1.bf16.msra.mxu0 %v497
      %517 = vmatprep.subr.bf16.mxu0 0
      %518 = vmatpush1.bf16.msra.mxu0 %v496
      %519 = vmatprep.subr.bf16.mxu0 0
      %520 = vmatpush1.bf16.msra.mxu0 %v495
      %521 = vmatprep.subr.bf16.mxu0 0
      %522 = vmatpush1.bf16.msra.mxu0 %v494
      %523 = vmatprep.subr.bf16.mxu0 0
      %524 = vmatpush1.bf16.msra.mxu0 %v493
      %525 = vmatprep.subr.bf16.mxu0 0
      %526 = vmatpush2.bf16.msra.mxu0 0
      %527 = vmatprep.subr.bf16.mxu0 0
      %528 = vmatpush2.bf16.msra.mxu0 0
      %529 = vmatprep.subr.bf16.mxu0 0
      %530 = vmatpush2.bf16.msra.mxu0 0
      %531 = vmatprep.subr.bf16.mxu0 0
      %532 = vmatpush2.bf16.msra.mxu0 0
      %533 = vmatprep.subr.bf16.mxu0 0
      %534 = vmatpush2.bf16.msra.mxu0 0
      %535 = vmatprep.subr.bf16.mxu0 0
      %536 = vmatpush2.bf16.msra.mxu0 0
      %537 = vmatprep.subr.bf16.mxu0 0
      %538 = vmatpush2.bf16.msra.mxu0 0
      %539 = vmatprep.subr.bf16.mxu0 0
      %540 = vmatpush2.bf16.msra.mxu0 0
      %541 = vmatprep.mubr.bf16.mxu0 0
      %542 = vmatmul.mubr.bf16.gmra.mxu0 %v431
      %v543 = vpop.f32.mrf.mxu0
      %v544 = vadd.f32 %v460, %v543
      %v545 = vpop.f32.mrf.mxu0
      %v546 = vpop.f32.mrf.mxu0
      %v547 = vadd.f32 %v460, %v546
      %v548 = vpop.f32.mrf.mxu0
      %549 = vmatprep.mubr.bf16.mxu0 0
      %550 = vmatmul.mubr.bf16.gmra.mxu0 %v432
      %v551 = vpop.f32.mrf.mxu0
      %v552 = vadd.f32 %v460, %v551
      %v553 = vpop.f32.mrf.mxu0
      %v554 = vpop.f32.mrf.mxu0
      %v555 = vadd.f32 %v460, %v554
      %v556 = vpop.f32.mrf.mxu0
      %557 = vmatprep.mubr.bf16.mxu0 0
      %558 = vmatmul.mubr.bf16.gmra.mxu0 %v433
      %v559 = vpop.f32.mrf.mxu0
      %v560 = vadd.f32 %v460, %v559
      %v561 = vpop.f32.mrf.mxu0
      %v562 = vpop.f32.mrf.mxu0
      %v563 = vadd.f32 %v460, %v562
      %v564 = vpop.f32.mrf.mxu0
      %565 = vmatprep.mubr.bf16.mxu0 0
      %566 = vmatmul.mubr.bf16.gmra.mxu0 %v434
      %v567 = vpop.f32.mrf.mxu0
      %v568 = vadd.f32 %v460, %v567
      %v569 = vpop.f32.mrf.mxu0
      %v570 = vpop.f32.mrf.mxu0
      %v571 = vadd.f32 %v460, %v570
      %v572 = vpop.f32.mrf.mxu0
      %573 = vmatprep.mubr.bf16.mxu0 0
      %574 = vmatmul.mubr.bf16.gmra.mxu0 %v435
      %v575 = vpop.f32.mrf.mxu0
      %v576 = vadd.f32 %v460, %v575
      %v577 = vpop.f32.mrf.mxu0
      %v578 = vpop.f32.mrf.mxu0
      %v579 = vadd.f32 %v460, %v578
      %v580 = vpop.f32.mrf.mxu0
      %581 = vmatprep.mubr.bf16.mxu0 0
      %582 = vmatmul.mubr.bf16.gmra.mxu0 %v436
      %v583 = vpop.f32.mrf.mxu0
      %v584 = vadd.f32 %v460, %v583
      %v585 = vpop.f32.mrf.mxu0
      %v586 = vpop.f32.mrf.mxu0
      %v587 = vadd.f32 %v460, %v586
      %v588 = vpop.f32.mrf.mxu0
      %589 = vmatprep.mubr.bf16.mxu0 0
      %590 = vmatmul.mubr.bf16.gmra.mxu0 %v437
      %v591 = vpop.f32.mrf.mxu0
      %v592 = vadd.f32 %v460, %v591
      %v593 = vpop.f32.mrf.mxu0
      %v594 = vpop.f32.mrf.mxu0
      %v595 = vadd.f32 %v460, %v594
      %v596 = vpop.f32.mrf.mxu0
      %597 = vmatprep.mubr.bf16.mxu0 0
      %598 = vmatmul.mubr.bf16.gmra.mxu0 %v438
      %v599 = vpop.f32.mrf.mxu0
      %v600 = vadd.f32 %v460, %v599
      %v601 = vpop.f32.mrf.mxu0
      %v602 = vpop.f32.mrf.mxu0
      %v603 = vadd.f32 %v460, %v602
      %v604 = vpop.f32.mrf.mxu0
      %605 = vdwg.mxu0
      %v606 = vtanh.pop %v544
      %v607 = vtanh.pop %v547
      %v608 = vtanh.pop %v552
      %v609 = vtanh.pop %v555
      %v610 = vtanh.pop %v560
      %v611 = vtanh.pop %v563
      %v612 = vtanh.pop %v568
      %v613 = vtanh.pop %v571
      %v614 = vtanh.pop %v576
      %v615 = vtanh.pop %v579
      %v616 = vtanh.pop %v584
      %v617 = vtanh.pop %v587
      %v618 = vtanh.pop %v592
      %v619 = vtanh.pop %v595
      %v620 = vtanh.pop %v600
      %v621 = vtanh.pop %v603
      %s622 = scalar_lea.vmem %s2, 128
      %v623 = vld [vmem:[%s622] sm:$0x3]
      %v624 = vld [vmem:[%s3 + $0x2] sm:$0x1]
      %v625 = vlaneseq
      %v626 = vshrl.u32 %v625, 7
      %v627 = vsub.s32 0, %v626
      %v628 = vrot.slane %v624, %v627
      %vm629 = vcmask 31744
      %v631 = vsel %vm629, %v264, 0
      %v634 = vsel %vm629, %v265, 0
      %v637 = vsel %vm629, %v266, 0
      %v640 = vsel %vm629, %v267, 0
      %v643 = vsel %vm629, %v268, 0
      %v646 = vsel %vm629, %v269, 0
      %v649 = vsel %vm629, %v270, 0
      %v652 = vsel %vm629, %v271, 0
      %vm654 = vcmask 1041408
      %v656 = vsel %vm654, %v623, 0
      %658 = vmatprep.subr.bf16.mxu0 0
      %659 = vmatpush1.bf16.msra.mxu0 0
      %660 = vmatprep.subr.bf16.mxu0 0
      %661 = vmatpush1.bf16.msra.mxu0 0
      %662 = vmatprep.subr.bf16.mxu0 0
      %663 = vmatpush1.bf16.msra.mxu0 0
      %664 = vmatprep.subr.bf16.mxu0 0
      %665 = vmatpush1.bf16.msra.mxu0 0
      %666 = vmatprep.subr.bf16.mxu0 0
      %667 = vmatpush1.bf16.msra.mxu0 0
      %668 = vmatprep.subr.bf16.mxu0 0
      %669 = vmatpush1.bf16.msra.mxu0 0
      %670 = vmatprep.subr.bf16.mxu0 0
      %671 = vmatpush1.bf16.msra.mxu0 0
      %672 = vmatprep.subr.bf16.mxu0 0
      %673 = vmatpush1.bf16.msra.mxu0 %v656
      %674 = vmatprep.subr.bf16.mxu0 0
      %675 = vmatpush2.bf16.msra.mxu0 0
      %676 = vmatprep.subr.bf16.mxu0 0
      %677 = vmatpush2.bf16.msra.mxu0 0
      %678 = vmatprep.subr.bf16.mxu0 0
      %679 = vmatpush2.bf16.msra.mxu0 0
      %680 = vmatprep.subr.bf16.mxu0 0
      %681 = vmatpush2.bf16.msra.mxu0 0
      %682 = vmatprep.subr.bf16.mxu0 0
      %683 = vmatpush2.bf16.msra.mxu0 0
      %684 = vmatprep.subr.bf16.mxu0 0
      %685 = vmatpush2.bf16.msra.mxu0 0
      %686 = vmatprep.subr.bf16.mxu0 0
      %687 = vmatpush2.bf16.msra.mxu0 0
      %688 = vmatprep.subr.bf16.mxu0 0
      %689 = vmatpush2.bf16.msra.mxu0 0
      %690 = vmatprep.mubr.bf16.mxu0 0
      %691 = vmatmul.mubr.bf16.gmra.mxu0 %v631
      %v692 = vpop.f32.mrf.mxu0
      %v693 = vadd.f32 %v628, %v692
      %v694 = vpop.f32.mrf.mxu0
      %v695 = vpop.f32.mrf.mxu0
      %v696 = vadd.f32 %v628, %v695
      %v697 = vpop.f32.mrf.mxu0
      %698 = vmatprep.mubr.bf16.mxu0 0
      %699 = vmatmul.mubr.bf16.gmra.mxu0 %v634
      %v700 = vpop.f32.mrf.mxu0
      %v701 = vadd.f32 %v628, %v700
      %v702 = vpop.f32.mrf.mxu0
      %v703 = vpop.f32.mrf.mxu0
      %v704 = vadd.f32 %v628, %v703
      %v705 = vpop.f32.mrf.mxu0
      %706 = vmatprep.mubr.bf16.mxu0 0
      %707 = vmatmul.mubr.bf16.gmra.mxu0 %v637
      %v708 = vpop.f32.mrf.mxu0
      %v709 = vadd.f32 %v628, %v708
      %v710 = vpop.f32.mrf.mxu0
      %v711 = vpop.f32.mrf.mxu0
      %v712 = vadd.f32 %v628, %v711
      %v713 = vpop.f32.mrf.mxu0
      %714 = vmatprep.mubr.bf16.mxu0 0
      %715 = vmatmul.mubr.bf16.gmra.mxu0 %v640
      %v716 = vpop.f32.mrf.mxu0
      %v717 = vadd.f32 %v628, %v716
      %v718 = vpop.f32.mrf.mxu0
      %v719 = vpop.f32.mrf.mxu0
      %v720 = vadd.f32 %v628, %v719
      %v721 = vpop.f32.mrf.mxu0
      %722 = vmatprep.mubr.bf16.mxu0 0
      %723 = vmatmul.mubr.bf16.gmra.mxu0 %v643
      %v724 = vpop.f32.mrf.mxu0
      %v725 = vadd.f32 %v628, %v724
      %v726 = vpop.f32.mrf.mxu0
      %v727 = vpop.f32.mrf.mxu0
      %v728 = vadd.f32 %v628, %v727
      %v729 = vpop.f32.mrf.mxu0
      %730 = vmatprep.mubr.bf16.mxu0 0
      %731 = vmatmul.mubr.bf16.gmra.mxu0 %v646
      %v732 = vpop.f32.mrf.mxu0
      %v733 = vadd.f32 %v628, %v732
      %v734 = vpop.f32.mrf.mxu0
      %v735 = vpop.f32.mrf.mxu0
      %v736 = vadd.f32 %v628, %v735
      %v737 = vpop.f32.mrf.mxu0
      %738 = vmatprep.mubr.bf16.mxu0 0
      %739 = vmatmul.mubr.bf16.gmra.mxu0 %v649
      %v740 = vpop.f32.mrf.mxu0
      %v741 = vadd.f32 %v628, %v740
      %v742 = vpop.f32.mrf.mxu0
      %v743 = vpop.f32.mrf.mxu0
      %v744 = vadd.f32 %v628, %v743
      %v745 = vpop.f32.mrf.mxu0
      %746 = vmatprep.mubr.bf16.mxu0 0
      %747 = vmatmul.mubr.bf16.gmra.mxu0 %v652
      %v748 = vpop.f32.mrf.mxu0
      %v749 = vadd.f32 %v628, %v748
      %v750 = vpop.f32.mrf.mxu0
      %v751 = vpop.f32.mrf.mxu0
      %v752 = vadd.f32 %v628, %v751
      %v753 = vpop.f32.mrf.mxu0
      %754 = vdwg.mxu0
      %v755 = vtanh.pop %v693
      %v756 = vtanh.pop %v696
      %v757 = vtanh.pop %v701
      %v758 = vtanh.pop %v704
      %v759 = vtanh.pop %v709
      %v760 = vtanh.pop %v712
      %v761 = vtanh.pop %v717
      %v762 = vtanh.pop %v720
      %v763 = vtanh.pop %v725
      %v764 = vtanh.pop %v728
      %v765 = vtanh.pop %v733
      %v766 = vtanh.pop %v736
      %v767 = vtanh.pop %v741
      %v768 = vtanh.pop %v744
      %v769 = vtanh.pop %v749
      %v770 = vtanh.pop %v752
      %v771 = vpack.c.bf16 %v756, %v755
      %v772 = vpack.c.bf16 %v758, %v757
      %v773 = vpack.c.bf16 %v760, %v759
      %v774 = vpack.c.bf16 %v762, %v761
      %v775 = vpack.c.bf16 %v764, %v763
      %v776 = vpack.c.bf16 %v766, %v765
      %v777 = vpack.c.bf16 %v768, %v767
      %v778 = vpack.c.bf16 %v770, %v769
      %s779 = scalar_lea.vmem %s2, 192
      %v780 = vld [vmem:[%s779] sm:$0xf]
      %v781 = vld [vmem:[%s779 + $0x4] sm:$0xf]
      %v782 = vld [vmem:[%s779 + $0x8] sm:$0xf]
      %v783 = vld [vmem:[%s779 + $0xc] sm:$0xf]
      %v784 = vld [vmem:[%s779 + $0x10] sm:$0xf]
      %v785 = vld [vmem:[%s779 + $0x14] sm:$0xf]
      %v786 = vld [vmem:[%s779 + $0x18] sm:$0xf]
      %v787 = vld [vmem:[%s779 + $0x1c] sm:$0xf]
      %v788 = vld [vmem:[%s779 + $0x20] sm:$0xf]
      %v789 = vld [vmem:[%s779 + $0x24] sm:$0xf]
      %v790 = vld [vmem:[%s779 + $0x28] sm:$0xf]
      %v791 = vld [vmem:[%s779 + $0x2c] sm:$0xf]
      %v792 = vld [vmem:[%s779 + $0x30] sm:$0xf]
      %v793 = vld [vmem:[%s779 + $0x34] sm:$0xf]
      %v794 = vld [vmem:[%s779 + $0x38] sm:$0xf]
      %v795 = vld [vmem:[%s779 + $0x3c] sm:$0xf]
      %v796 = vpack.c.bf16 %v607, %v606
      %v797 = vpack.c.bf16 %v609, %v608
      %v798 = vpack.c.bf16 %v611, %v610
      %v799 = vpack.c.bf16 %v613, %v612
      %v800 = vpack.c.bf16 %v615, %v614
      %v801 = vpack.c.bf16 %v617, %v616
      %v802 = vpack.c.bf16 %v619, %v618
      %v803 = vpack.c.bf16 %v621, %v620
      %s804 = scalar_lea.vmem %s2, 256
      %v805 = vld [vmem:[%s804] sm:$0xf]
      %v806 = vld [vmem:[%s804 + $0x4] sm:$0xf]
      %v807 = vld [vmem:[%s804 + $0x8] sm:$0xf]
      %v808 = vld [vmem:[%s804 + $0xc] sm:$0xf]
      %v809 = vld [vmem:[%s804 + $0x10] sm:$0xf]
      %v810 = vld [vmem:[%s804 + $0x14] sm:$0xf]
      %v811 = vld [vmem:[%s804 + $0x18] sm:$0xf]
      %v812 = vld [vmem:[%s804 + $0x1c] sm:$0xf]
      %v813 = vld [vmem:[%s804 + $0x20] sm:$0xf]
      %v814 = vld [vmem:[%s804 + $0x24] sm:$0xf]
      %v815 = vld [vmem:[%s804 + $0x28] sm:$0xf]
      %v816 = vld [vmem:[%s804 + $0x2c] sm:$0xf]
      %v817 = vld [vmem:[%s804 + $0x30] sm:$0xf]
      %v818 = vld [vmem:[%s804 + $0x34] sm:$0xf]
      %v819 = vld [vmem:[%s804 + $0x38] sm:$0xf]
      %v820 = vld [vmem:[%s804 + $0x3c] sm:$0xf]
      %v837 = vunpack.c.l.b16 %v805
      %v838 = vunpack.c.l.b16 %v806
      %v839 = vunpack.c.l.b16 %v807
      %v840 = vunpack.c.l.b16 %v808
      %v841 = vunpack.c.l.b16 %v809
      %v842 = vunpack.c.l.b16 %v810
      %v843 = vunpack.c.l.b16 %v811
      %v844 = vunpack.c.l.b16 %v812
      %v845 = vunpack.c.l.b16 %v813
      %v846 = vunpack.c.l.b16 %v814
      %v847 = vunpack.c.l.b16 %v815
      %v848 = vunpack.c.l.b16 %v816
      %v849 = vunpack.c.l.b16 %v817
      %v850 = vunpack.c.l.b16 %v818
      %v851 = vunpack.c.l.b16 %v819
      %v852 = vunpack.c.l.b16 %v820
      %v853 = vpack.c.b16 %v838, %v837
      %v854 = vpack.c.b16 %v840, %v839
      %v855 = vpack.c.b16 %v842, %v841
      %v856 = vpack.c.b16 %v844, %v843
      %v857 = vpack.c.b16 %v846, %v845
      %v858 = vpack.c.b16 %v848, %v847
      %v859 = vpack.c.b16 %v850, %v849
      %v860 = vpack.c.b16 %v852, %v851
      %869 = vmatprep.subr.bf16.mxu0 0
      %870 = vmatpush1.bf16.msra.mxu0 %v860
      %871 = vmatprep.subr.bf16.mxu0 0
      %872 = vmatpush1.bf16.msra.mxu0 %v859
      %873 = vmatprep.subr.bf16.mxu0 0
      %874 = vmatpush1.bf16.msra.mxu0 %v858
      %875 = vmatprep.subr.bf16.mxu0 0
      %876 = vmatpush1.bf16.msra.mxu0 %v857
      %877 = vmatprep.subr.bf16.mxu0 0
      %878 = vmatpush1.bf16.msra.mxu0 %v856
      %879 = vmatprep.subr.bf16.mxu0 0
      %880 = vmatpush1.bf16.msra.mxu0 %v855
      %881 = vmatprep.subr.bf16.mxu0 0
      %882 = vmatpush1.bf16.msra.mxu0 %v854
      %883 = vmatprep.subr.bf16.mxu0 0
      %884 = vmatpush1.bf16.msra.mxu0 %v853
      %885 = vmatprep.subr.bf16.mxu0 0
      %886 = vmatpush2.bf16.msra.mxu0 0
      %887 = vmatprep.subr.bf16.mxu0 0
      %888 = vmatpush2.bf16.msra.mxu0 0
      %889 = vmatprep.subr.bf16.mxu0 0
      %890 = vmatpush2.bf16.msra.mxu0 0
      %891 = vmatprep.subr.bf16.mxu0 0
      %892 = vmatpush2.bf16.msra.mxu0 0
      %893 = vmatprep.subr.bf16.mxu0 0
      %894 = vmatpush2.bf16.msra.mxu0 0
      %895 = vmatprep.subr.bf16.mxu0 0
      %896 = vmatpush2.bf16.msra.mxu0 0
      %897 = vmatprep.subr.bf16.mxu0 0
      %898 = vmatpush2.bf16.msra.mxu0 0
      %899 = vmatprep.subr.bf16.mxu0 0
      %900 = vmatpush2.bf16.msra.mxu0 0
      %901 = vmatprep.mubr.bf16.mxu0 0
      %902 = vmatmul.mubr.bf16.gmra.mxu0 %v796
      %v903 = vpop.f32.mrf.mxu0
      %v904 = vadd.f32 0.0, %v903
      %v905 = vpop.f32.mrf.mxu0
      %v906 = vpop.f32.mrf.mxu0
      %v907 = vadd.f32 0.0, %v906
      %v908 = vpop.f32.mrf.mxu0
      %909 = vmatprep.mubr.bf16.mxu0 0
      %910 = vmatmul.mubr.bf16.gmra.mxu0 %v797
      %v911 = vpop.f32.mrf.mxu0
      %v912 = vadd.f32 0.0, %v911
      %v913 = vpop.f32.mrf.mxu0
      %v914 = vpop.f32.mrf.mxu0
      %v915 = vadd.f32 0.0, %v914
      %v916 = vpop.f32.mrf.mxu0
      %917 = vmatprep.mubr.bf16.mxu0 0
      %918 = vmatmul.mubr.bf16.gmra.mxu0 %v798
      %v919 = vpop.f32.mrf.mxu0
      %v920 = vadd.f32 0.0, %v919
      %v921 = vpop.f32.mrf.mxu0
      %v922 = vpop.f32.mrf.mxu0
      %v923 = vadd.f32 0.0, %v922
      %v924 = vpop.f32.mrf.mxu0
      %925 = vmatprep.mubr.bf16.mxu0 0
      %926 = vmatmul.mubr.bf16.gmra.mxu0 %v799
      %v927 = vpop.f32.mrf.mxu0
      %v928 = vadd.f32 0.0, %v927
      %v929 = vpop.f32.mrf.mxu0
      %v930 = vpop.f32.mrf.mxu0
      %v931 = vadd.f32 0.0, %v930
      %v932 = vpop.f32.mrf.mxu0
      %933 = vmatprep.mubr.bf16.mxu0 0
      %934 = vmatmul.mubr.bf16.gmra.mxu0 %v800
      %v935 = vpop.f32.mrf.mxu0
      %v936 = vadd.f32 0.0, %v935
      %v937 = vpop.f32.mrf.mxu0
      %v938 = vpop.f32.mrf.mxu0
      %v939 = vadd.f32 0.0, %v938
      %v940 = vpop.f32.mrf.mxu0
      %941 = vmatprep.mubr.bf16.mxu0 0
      %942 = vmatmul.mubr.bf16.gmra.mxu0 %v801
      %v943 = vpop.f32.mrf.mxu0
      %v944 = vadd.f32 0.0, %v943
      %v945 = vpop.f32.mrf.mxu0
      %v946 = vpop.f32.mrf.mxu0
      %v947 = vadd.f32 0.0, %v946
      %v948 = vpop.f32.mrf.mxu0
      %949 = vmatprep.mubr.bf16.mxu0 0
      %950 = vmatmul.mubr.bf16.gmra.mxu0 %v802
      %v951 = vpop.f32.mrf.mxu0
      %v952 = vadd.f32 0.0, %v951
      %v953 = vpop.f32.mrf.mxu0
      %v954 = vpop.f32.mrf.mxu0
      %v955 = vadd.f32 0.0, %v954
      %v956 = vpop.f32.mrf.mxu0
      %957 = vmatprep.mubr.bf16.mxu0 0
      %958 = vmatmul.mubr.bf16.gmra.mxu0 %v803
      %v959 = vpop.f32.mrf.mxu0
      %v960 = vadd.f32 0.0, %v959
      %v961 = vpop.f32.mrf.mxu0
      %v962 = vpop.f32.mrf.mxu0
      %v963 = vadd.f32 0.0, %v962
      %v964 = vpop.f32.mrf.mxu0
      %965 = vdwg.mxu0
      %v982 = vunpack.c.l.b16 %v780
      %v983 = vunpack.c.l.b16 %v781
      %v984 = vunpack.c.l.b16 %v782
      %v985 = vunpack.c.l.b16 %v783
      %v986 = vunpack.c.l.b16 %v784
      %v987 = vunpack.c.l.b16 %v785
      %v988 = vunpack.c.l.b16 %v786
      %v989 = vunpack.c.l.b16 %v787
      %v990 = vunpack.c.l.b16 %v788
      %v991 = vunpack.c.l.b16 %v789
      %v992 = vunpack.c.l.b16 %v790
      %v993 = vunpack.c.l.b16 %v791
      %v994 = vunpack.c.l.b16 %v792
      %v995 = vunpack.c.l.b16 %v793
      %v996 = vunpack.c.l.b16 %v794
      %v997 = vunpack.c.l.b16 %v795
      %v998 = vpack.c.b16 %v983, %v982
      %v999 = vpack.c.b16 %v985, %v984
      %v1000 = vpack.c.b16 %v987, %v986
      %v1001 = vpack.c.b16 %v989, %v988
      %v1002 = vpack.c.b16 %v991, %v990
      %v1003 = vpack.c.b16 %v993, %v992
      %v1004 = vpack.c.b16 %v995, %v994
      %v1005 = vpack.c.b16 %v997, %v996
      %1014 = vmatprep.subr.bf16.mxu0 0
      %1015 = vmatpush1.bf16.msra.mxu0 %v1005
      %1016 = vmatprep.subr.bf16.mxu0 0
      %1017 = vmatpush1.bf16.msra.mxu0 %v1004
      %1018 = vmatprep.subr.bf16.mxu0 0
      %1019 = vmatpush1.bf16.msra.mxu0 %v1003
      %1020 = vmatprep.subr.bf16.mxu0 0
      %1021 = vmatpush1.bf16.msra.mxu0 %v1002
      %1022 = vmatprep.subr.bf16.mxu0 0
      %1023 = vmatpush1.bf16.msra.mxu0 %v1001
      %1024 = vmatprep.subr.bf16.mxu0 0
      %1025 = vmatpush1.bf16.msra.mxu0 %v1000
      %1026 = vmatprep.subr.bf16.mxu0 0
      %1027 = vmatpush1.bf16.msra.mxu0 %v999
      %1028 = vmatprep.subr.bf16.mxu0 0
      %1029 = vmatpush1.bf16.msra.mxu0 %v998
      %1030 = vmatprep.subr.bf16.mxu0 0
      %1031 = vmatpush2.bf16.msra.mxu0 0
      %1032 = vmatprep.subr.bf16.mxu0 0
      %1033 = vmatpush2.bf16.msra.mxu0 0
      %1034 = vmatprep.subr.bf16.mxu0 0
      %1035 = vmatpush2.bf16.msra.mxu0 0
      %1036 = vmatprep.subr.bf16.mxu0 0
      %1037 = vmatpush2.bf16.msra.mxu0 0
      %1038 = vmatprep.subr.bf16.mxu0 0
      %1039 = vmatpush2.bf16.msra.mxu0 0
      %1040 = vmatprep.subr.bf16.mxu0 0
      %1041 = vmatpush2.bf16.msra.mxu0 0
      %1042 = vmatprep.subr.bf16.mxu0 0
      %1043 = vmatpush2.bf16.msra.mxu0 0
      %1044 = vmatprep.subr.bf16.mxu0 0
      %1045 = vmatpush2.bf16.msra.mxu0 0
      %1046 = vmatprep.mubr.bf16.mxu0 0
      %1047 = vmatmul.mubr.bf16.gmra.mxu0 %v771
      %v1048 = vpop.f32.mrf.mxu0
      %v1049 = vadd.f32 %v904, %v1048
      %v1050 = vpop.f32.mrf.mxu0
      %v1051 = vpop.f32.mrf.mxu0
      %v1052 = vadd.f32 %v907, %v1051
      %v1053 = vpop.f32.mrf.mxu0
      %1054 = vmatprep.mubr.bf16.mxu0 0
      %1055 = vmatmul.mubr.bf16.gmra.mxu0 %v772
      %v1056 = vpop.f32.mrf.mxu0
      %v1057 = vadd.f32 %v912, %v1056
      %v1058 = vpop.f32.mrf.mxu0
      %v1059 = vpop.f32.mrf.mxu0
      %v1060 = vadd.f32 %v915, %v1059
      %v1061 = vpop.f32.mrf.mxu0
      %1062 = vmatprep.mubr.bf16.mxu0 0
      %1063 = vmatmul.mubr.bf16.gmra.mxu0 %v773
      %v1064 = vpop.f32.mrf.mxu0
      %v1065 = vadd.f32 %v920, %v1064
      %v1066 = vpop.f32.mrf.mxu0
      %v1067 = vpop.f32.mrf.mxu0
      %v1068 = vadd.f32 %v923, %v1067
      %v1069 = vpop.f32.mrf.mxu0
      %1070 = vmatprep.mubr.bf16.mxu0 0
      %1071 = vmatmul.mubr.bf16.gmra.mxu0 %v774
      %v1072 = vpop.f32.mrf.mxu0
      %v1073 = vadd.f32 %v928, %v1072
      %v1074 = vpop.f32.mrf.mxu0
      %v1075 = vpop.f32.mrf.mxu0
      %v1076 = vadd.f32 %v931, %v1075
      %v1077 = vpop.f32.mrf.mxu0
      %1078 = vmatprep.mubr.bf16.mxu0 0
      %1079 = vmatmul.mubr.bf16.gmra.mxu0 %v775
      %v1080 = vpop.f32.mrf.mxu0
      %v1081 = vadd.f32 %v936, %v1080
      %v1082 = vpop.f32.mrf.mxu0
      %v1083 = vpop.f32.mrf.mxu0
      %v1084 = vadd.f32 %v939, %v1083
      %v1085 = vpop.f32.mrf.mxu0
      %1086 = vmatprep.mubr.bf16.mxu0 0
      %1087 = vmatmul.mubr.bf16.gmra.mxu0 %v776
      %v1088 = vpop.f32.mrf.mxu0
      %v1089 = vadd.f32 %v944, %v1088
      %v1090 = vpop.f32.mrf.mxu0
      %v1091 = vpop.f32.mrf.mxu0
      %v1092 = vadd.f32 %v947, %v1091
      %v1093 = vpop.f32.mrf.mxu0
      %1094 = vmatprep.mubr.bf16.mxu0 0
      %1095 = vmatmul.mubr.bf16.gmra.mxu0 %v777
      %v1096 = vpop.f32.mrf.mxu0
      %v1097 = vadd.f32 %v952, %v1096
      %v1098 = vpop.f32.mrf.mxu0
      %v1099 = vpop.f32.mrf.mxu0
      %v1100 = vadd.f32 %v955, %v1099
      %v1101 = vpop.f32.mrf.mxu0
      %1102 = vmatprep.mubr.bf16.mxu0 0
      %1103 = vmatmul.mubr.bf16.gmra.mxu0 %v778
      %v1104 = vpop.f32.mrf.mxu0
      %v1105 = vadd.f32 %v960, %v1104
      %v1106 = vpop.f32.mrf.mxu0
      %v1107 = vpop.f32.mrf.mxu0
      %v1108 = vadd.f32 %v963, %v1107
      %v1109 = vpop.f32.mrf.mxu0
      %1110 = vdwg.mxu0
      %v1111 = vld [vmem:[%s3 + $0x3] sm:$0x1]
      %v1112 = vlaneseq
      %v1113 = vshrl.u32 %v1112, 7
      %v1114 = vsub.s32 0, %v1113
      %v1115 = vrot.slane %v1111, %v1114
      %v1116 = vadd.f32 %v1049, %v1115
      %v1117 = vadd.f32 %v1052, %v1115
      %v1118 = vadd.f32 %v1057, %v1115
      %v1119 = vadd.f32 %v1060, %v1115
      %v1120 = vadd.f32 %v1065, %v1115
      %v1121 = vadd.f32 %v1068, %v1115
      %v1122 = vadd.f32 %v1073, %v1115
      %v1123 = vadd.f32 %v1076, %v1115
      %v1124 = vadd.f32 %v1081, %v1115
      %v1125 = vadd.f32 %v1084, %v1115
      %v1126 = vadd.f32 %v1089, %v1115
      %v1127 = vadd.f32 %v1092, %v1115
      %v1128 = vadd.f32 %v1097, %v1115
      %v1129 = vadd.f32 %v1100, %v1115
      %v1130 = vadd.f32 %v1105, %v1115
      %v1131 = vadd.f32 %v1108, %v1115
      %v1132 = vtanh.pop %v1116
      %v1133 = vtanh.pop %v1117
      %v1134 = vtanh.pop %v1118
      %v1135 = vtanh.pop %v1119
      %v1136 = vtanh.pop %v1120
      %v1137 = vtanh.pop %v1121
      %v1138 = vtanh.pop %v1122
      %v1139 = vtanh.pop %v1123
      %v1140 = vtanh.pop %v1124
      %v1141 = vtanh.pop %v1125
      %v1142 = vtanh.pop %v1126
      %v1143 = vtanh.pop %v1127
      %v1144 = vtanh.pop %v1128
      %v1145 = vtanh.pop %v1129
      %v1146 = vtanh.pop %v1130
      %v1147 = vtanh.pop %v1131
      %v1148 = vpack.c.bf16 %v1133, %v1132
      %v1149 = vpack.c.bf16 %v1135, %v1134
      %v1150 = vpack.c.bf16 %v1137, %v1136
      %v1151 = vpack.c.bf16 %v1139, %v1138
      %v1152 = vpack.c.bf16 %v1141, %v1140
      %v1153 = vpack.c.bf16 %v1143, %v1142
      %v1154 = vpack.c.bf16 %v1145, %v1144
      %v1155 = vpack.c.bf16 %v1147, %v1146
      %s1156 = scalar_lea.vmem %s2, 320
      %v1157 = vld [vmem:[%s1156] sm:$0xf]
      %v1158 = vld [vmem:[%s1156 + $0x4] sm:$0xf]
      %v1159 = vld [vmem:[%s1156 + $0x8] sm:$0xf]
      %v1160 = vld [vmem:[%s1156 + $0xc] sm:$0xf]
      %v1161 = vld [vmem:[%s1156 + $0x10] sm:$0xf]
      %v1162 = vld [vmem:[%s1156 + $0x14] sm:$0xf]
      %v1163 = vld [vmem:[%s1156 + $0x18] sm:$0xf]
      %v1164 = vld [vmem:[%s1156 + $0x1c] sm:$0xf]
      %v1165 = vld [vmem:[%s1156 + $0x20] sm:$0xf]
      %v1166 = vld [vmem:[%s1156 + $0x24] sm:$0xf]
      %v1167 = vld [vmem:[%s1156 + $0x28] sm:$0xf]
      %v1168 = vld [vmem:[%s1156 + $0x2c] sm:$0xf]
      %v1169 = vld [vmem:[%s1156 + $0x30] sm:$0xf]
      %v1170 = vld [vmem:[%s1156 + $0x34] sm:$0xf]
      %v1171 = vld [vmem:[%s1156 + $0x38] sm:$0xf]
      %v1172 = vld [vmem:[%s1156 + $0x3c] sm:$0xf]
      %v1173 = vld [vmem:[%s3 + $0x4] sm:$0x1]
      %v1174 = vlaneseq
      %v1175 = vshrl.u32 %v1174, 7
      %v1176 = vsub.s32 0, %v1175
      %v1177 = vrot.slane %v1173, %v1176
      %v1194 = vunpack.c.l.b16 %v1157
      %v1195 = vunpack.c.l.b16 %v1158
      %v1196 = vunpack.c.l.b16 %v1159
      %v1197 = vunpack.c.l.b16 %v1160
      %v1198 = vunpack.c.l.b16 %v1161
      %v1199 = vunpack.c.l.b16 %v1162
      %v1200 = vunpack.c.l.b16 %v1163
      %v1201 = vunpack.c.l.b16 %v1164
      %v1202 = vunpack.c.l.b16 %v1165
      %v1203 = vunpack.c.l.b16 %v1166
      %v1204 = vunpack.c.l.b16 %v1167
      %v1205 = vunpack.c.l.b16 %v1168
      %v1206 = vunpack.c.l.b16 %v1169
      %v1207 = vunpack.c.l.b16 %v1170
      %v1208 = vunpack.c.l.b16 %v1171
      %v1209 = vunpack.c.l.b16 %v1172
      %v1210 = vpack.c.b16 %v1195, %v1194
      %v1211 = vpack.c.b16 %v1197, %v1196
      %v1212 = vpack.c.b16 %v1199, %v1198
      %v1213 = vpack.c.b16 %v1201, %v1200
      %v1214 = vpack.c.b16 %v1203, %v1202
      %v1215 = vpack.c.b16 %v1205, %v1204
      %v1216 = vpack.c.b16 %v1207, %v1206
      %v1217 = vpack.c.b16 %v1209, %v1208
      %1226 = vmatprep.subr.bf16.mxu0 0
      %1227 = vmatpush1.bf16.msra.mxu0 %v1217
      %1228 = vmatprep.subr.bf16.mxu0 0
      %1229 = vmatpush1.bf16.msra.mxu0 %v1216
      %1230 = vmatprep.subr.bf16.mxu0 0
      %1231 = vmatpush1.bf16.msra.mxu0 %v1215
      %1232 = vmatprep.subr.bf16.mxu0 0
      %1233 = vmatpush1.bf16.msra.mxu0 %v1214
      %1234 = vmatprep.subr.bf16.mxu0 0
      %1235 = vmatpush1.bf16.msra.mxu0 %v1213
      %1236 = vmatprep.subr.bf16.mxu0 0
      %1237 = vmatpush1.bf16.msra.mxu0 %v1212
      %1238 = vmatprep.subr.bf16.mxu0 0
      %1239 = vmatpush1.bf16.msra.mxu0 %v1211
      %1240 = vmatprep.subr.bf16.mxu0 0
      %1241 = vmatpush1.bf16.msra.mxu0 %v1210
      %1242 = vmatprep.subr.bf16.mxu0 0
      %1243 = vmatpush2.bf16.msra.mxu0 0
      %1244 = vmatprep.subr.bf16.mxu0 0
      %1245 = vmatpush2.bf16.msra.mxu0 0
      %1246 = vmatprep.subr.bf16.mxu0 0
      %1247 = vmatpush2.bf16.msra.mxu0 0
      %1248 = vmatprep.subr.bf16.mxu0 0
      %1249 = vmatpush2.bf16.msra.mxu0 0
      %1250 = vmatprep.subr.bf16.mxu0 0
      %1251 = vmatpush2.bf16.msra.mxu0 0
      %1252 = vmatprep.subr.bf16.mxu0 0
      %1253 = vmatpush2.bf16.msra.mxu0 0
      %1254 = vmatprep.subr.bf16.mxu0 0
      %1255 = vmatpush2.bf16.msra.mxu0 0
      %1256 = vmatprep.subr.bf16.mxu0 0
      %1257 = vmatpush2.bf16.msra.mxu0 0
      %1258 = vmatprep.mubr.bf16.mxu0 0
      %1259 = vmatmul.mubr.bf16.gmra.mxu0 %v1148
      %v1260 = vpop.f32.mrf.mxu0
      %v1261 = vadd.f32 %v1177, %v1260
      %v1262 = vpop.f32.mrf.mxu0
      %v1263 = vpop.f32.mrf.mxu0
      %v1264 = vadd.f32 %v1177, %v1263
      %v1265 = vpop.f32.mrf.mxu0
      %1266 = vmatprep.mubr.bf16.mxu0 0
      %1267 = vmatmul.mubr.bf16.gmra.mxu0 %v1149
      %v1268 = vpop.f32.mrf.mxu0
      %v1269 = vadd.f32 %v1177, %v1268
      %v1270 = vpop.f32.mrf.mxu0
      %v1271 = vpop.f32.mrf.mxu0
      %v1272 = vadd.f32 %v1177, %v1271
      %v1273 = vpop.f32.mrf.mxu0
      %1274 = vmatprep.mubr.bf16.mxu0 0
      %1275 = vmatmul.mubr.bf16.gmra.mxu0 %v1150
      %v1276 = vpop.f32.mrf.mxu0
      %v1277 = vadd.f32 %v1177, %v1276
      %v1278 = vpop.f32.mrf.mxu0
      %v1279 = vpop.f32.mrf.mxu0
      %v1280 = vadd.f32 %v1177, %v1279
      %v1281 = vpop.f32.mrf.mxu0
      %1282 = vmatprep.mubr.bf16.mxu0 0
      %1283 = vmatmul.mubr.bf16.gmra.mxu0 %v1151
      %v1284 = vpop.f32.mrf.mxu0
      %v1285 = vadd.f32 %v1177, %v1284
      %v1286 = vpop.f32.mrf.mxu0
      %v1287 = vpop.f32.mrf.mxu0
      %v1288 = vadd.f32 %v1177, %v1287
      %v1289 = vpop.f32.mrf.mxu0
      %1290 = vmatprep.mubr.bf16.mxu0 0
      %1291 = vmatmul.mubr.bf16.gmra.mxu0 %v1152
      %v1292 = vpop.f32.mrf.mxu0
      %v1293 = vadd.f32 %v1177, %v1292
      %v1294 = vpop.f32.mrf.mxu0
      %v1295 = vpop.f32.mrf.mxu0
      %v1296 = vadd.f32 %v1177, %v1295
      %v1297 = vpop.f32.mrf.mxu0
      %1298 = vmatprep.mubr.bf16.mxu0 0
      %1299 = vmatmul.mubr.bf16.gmra.mxu0 %v1153
      %v1300 = vpop.f32.mrf.mxu0
      %v1301 = vadd.f32 %v1177, %v1300
      %v1302 = vpop.f32.mrf.mxu0
      %v1303 = vpop.f32.mrf.mxu0
      %v1304 = vadd.f32 %v1177, %v1303
      %v1305 = vpop.f32.mrf.mxu0
      %1306 = vmatprep.mubr.bf16.mxu0 0
      %1307 = vmatmul.mubr.bf16.gmra.mxu0 %v1154
      %v1308 = vpop.f32.mrf.mxu0
      %v1309 = vadd.f32 %v1177, %v1308
      %v1310 = vpop.f32.mrf.mxu0
      %v1311 = vpop.f32.mrf.mxu0
      %v1312 = vadd.f32 %v1177, %v1311
      %v1313 = vpop.f32.mrf.mxu0
      %1314 = vmatprep.mubr.bf16.mxu0 0
      %1315 = vmatmul.mubr.bf16.gmra.mxu0 %v1155
      %v1316 = vpop.f32.mrf.mxu0
      %v1317 = vadd.f32 %v1177, %v1316
      %v1318 = vpop.f32.mrf.mxu0
      %v1319 = vpop.f32.mrf.mxu0
      %v1320 = vadd.f32 %v1177, %v1319
      %v1321 = vpop.f32.mrf.mxu0
      %1322 = vdwg.mxu0
      %1323 = vmax.xlane.f32.xlu0 %v1261
      %v1324 = vpop.xlane.xlu0 %1323
      %1325 = vmax.xlane.f32.xlu0 %v1264
      %v1326 = vpop.xlane.xlu0 %1325
      %1327 = vmax.xlane.f32.xlu0 %v1269
      %v1328 = vpop.xlane.xlu0 %1327
      %1329 = vmax.xlane.f32.xlu0 %v1272
      %v1330 = vpop.xlane.xlu0 %1329
      %1331 = vmax.xlane.f32.xlu0 %v1277
      %v1332 = vpop.xlane.xlu0 %1331
      %1333 = vmax.xlane.f32.xlu0 %v1280
      %v1334 = vpop.xlane.xlu0 %1333
      %1335 = vmax.xlane.f32.xlu0 %v1285
      %v1336 = vpop.xlane.xlu0 %1335
      %1337 = vmax.xlane.f32.xlu0 %v1288
      %v1338 = vpop.xlane.xlu0 %1337
      %1339 = vmax.xlane.f32.xlu0 %v1293
      %v1340 = vpop.xlane.xlu0 %1339
      %1341 = vmax.xlane.f32.xlu0 %v1296
      %v1342 = vpop.xlane.xlu0 %1341
      %1343 = vmax.xlane.f32.xlu0 %v1301
      %v1344 = vpop.xlane.xlu0 %1343
      %1345 = vmax.xlane.f32.xlu0 %v1304
      %v1346 = vpop.xlane.xlu0 %1345
      %1347 = vmax.xlane.f32.xlu0 %v1309
      %v1348 = vpop.xlane.xlu0 %1347
      %1349 = vmax.xlane.f32.xlu0 %v1312
      %v1350 = vpop.xlane.xlu0 %1349
      %1351 = vmax.xlane.f32.xlu0 %v1317
      %v1352 = vpop.xlane.xlu0 %1351
      %1353 = vmax.xlane.f32.xlu0 %v1320
      %v1354 = vpop.xlane.xlu0 %1353
      %v1355 = vsub.f32 %v1261, %v1324
      %v1356 = vsub.f32 %v1264, %v1326
      %v1357 = vsub.f32 %v1269, %v1328
      %v1358 = vsub.f32 %v1272, %v1330
      %v1359 = vsub.f32 %v1277, %v1332
      %v1360 = vsub.f32 %v1280, %v1334
      %v1361 = vsub.f32 %v1285, %v1336
      %v1362 = vsub.f32 %v1288, %v1338
      %v1363 = vsub.f32 %v1293, %v1340
      %v1364 = vsub.f32 %v1296, %v1342
      %v1365 = vsub.f32 %v1301, %v1344
      %v1366 = vsub.f32 %v1304, %v1346
      %v1367 = vsub.f32 %v1309, %v1348
      %v1368 = vsub.f32 %v1312, %v1350
      %v1369 = vsub.f32 %v1317, %v1352
      %v1370 = vsub.f32 %v1320, %v1354
      %v1371 = vmul.f32 %v1355, 1.442695
      %v1372 = vpow.pop %v1371
      %v1373 = vmul.f32 %v1356, 1.442695
      %v1374 = vpow.pop %v1373
      %v1375 = vmul.f32 %v1357, 1.442695
      %v1376 = vpow.pop %v1375
      %v1377 = vmul.f32 %v1358, 1.442695
      %v1378 = vpow.pop %v1377
      %v1379 = vmul.f32 %v1359, 1.442695
      %v1380 = vpow.pop %v1379
      %v1381 = vmul.f32 %v1360, 1.442695
      %v1382 = vpow.pop %v1381
      %v1383 = vmul.f32 %v1361, 1.442695
      %v1384 = vpow.pop %v1383
      %v1385 = vmul.f32 %v1362, 1.442695
      %v1386 = vpow.pop %v1385
      %v1387 = vmul.f32 %v1363, 1.442695
      %v1388 = vpow.pop %v1387
      %v1389 = vmul.f32 %v1364, 1.442695
      %v1390 = vpow.pop %v1389
      %v1391 = vmul.f32 %v1365, 1.442695
      %v1392 = vpow.pop %v1391
      %v1393 = vmul.f32 %v1366, 1.442695
      %v1394 = vpow.pop %v1393
      %v1395 = vmul.f32 %v1367, 1.442695
      %v1396 = vpow.pop %v1395
      %v1397 = vmul.f32 %v1368, 1.442695
      %v1398 = vpow.pop %v1397
      %v1399 = vmul.f32 %v1369, 1.442695
      %v1400 = vpow.pop %v1399
      %v1401 = vmul.f32 %v1370, 1.442695
      %v1402 = vpow.pop %v1401
      %1403 = vadd.xlane.f32.xlu0 %v1372
      %v1404 = vpop.xlane.xlu0 %1403
      %1405 = vadd.xlane.f32.xlu0 %v1374
      %v1406 = vpop.xlane.xlu0 %1405
      %1407 = vadd.xlane.f32.xlu0 %v1376
      %v1408 = vpop.xlane.xlu0 %1407
      %1409 = vadd.xlane.f32.xlu0 %v1378
      %v1410 = vpop.xlane.xlu0 %1409
      %1411 = vadd.xlane.f32.xlu0 %v1380
      %v1412 = vpop.xlane.xlu0 %1411
      %1413 = vadd.xlane.f32.xlu0 %v1382
      %v1414 = vpop.xlane.xlu0 %1413
      %1415 = vadd.xlane.f32.xlu0 %v1384
      %v1416 = vpop.xlane.xlu0 %1415
      %1417 = vadd.xlane.f32.xlu0 %v1386
      %v1418 = vpop.xlane.xlu0 %1417
      %1419 = vadd.xlane.f32.xlu0 %v1388
      %v1420 = vpop.xlane.xlu0 %1419
      %1421 = vadd.xlane.f32.xlu0 %v1390
      %v1422 = vpop.xlane.xlu0 %1421
      %1423 = vadd.xlane.f32.xlu0 %v1392
      %v1424 = vpop.xlane.xlu0 %1423
      %1425 = vadd.xlane.f32.xlu0 %v1394
      %v1426 = vpop.xlane.xlu0 %1425
      %1427 = vadd.xlane.f32.xlu0 %v1396
      %v1428 = vpop.xlane.xlu0 %1427
      %1429 = vadd.xlane.f32.xlu0 %v1398
      %v1430 = vpop.xlane.xlu0 %1429
      %1431 = vadd.xlane.f32.xlu0 %v1400
      %v1432 = vpop.xlane.xlu0 %1431
      %1433 = vadd.xlane.f32.xlu0 %v1402
      %v1434 = vpop.xlane.xlu0 %1433
      %v1435 = vrcp.pop %v1404
      %v1436 = vmul.f32 %v1372, %v1435
      %v1437 = vrcp.pop %v1406
      %v1438 = vmul.f32 %v1374, %v1437
      %v1439 = vrcp.pop %v1408
      %v1440 = vmul.f32 %v1376, %v1439
      %v1441 = vrcp.pop %v1410
      %v1442 = vmul.f32 %v1378, %v1441
      %v1443 = vrcp.pop %v1412
      %v1444 = vmul.f32 %v1380, %v1443
      %v1445 = vrcp.pop %v1414
      %v1446 = vmul.f32 %v1382, %v1445
      %v1447 = vrcp.pop %v1416
      %v1448 = vmul.f32 %v1384, %v1447
      %v1449 = vrcp.pop %v1418
      %v1450 = vmul.f32 %v1386, %v1449
      %v1451 = vrcp.pop %v1420
      %v1452 = vmul.f32 %v1388, %v1451
      %v1453 = vrcp.pop %v1422
      %v1454 = vmul.f32 %v1390, %v1453
      %v1455 = vrcp.pop %v1424
      %v1456 = vmul.f32 %v1392, %v1455
      %v1457 = vrcp.pop %v1426
      %v1458 = vmul.f32 %v1394, %v1457
      %v1459 = vrcp.pop %v1428
      %v1460 = vmul.f32 %v1396, %v1459
      %v1461 = vrcp.pop %v1430
      %v1462 = vmul.f32 %v1398, %v1461
      %v1463 = vrcp.pop %v1432
      %v1464 = vmul.f32 %v1400, %v1463
      %v1465 = vrcp.pop %v1434
      %v1466 = vmul.f32 %v1402, %v1465
      %1467 = vst.msk [vmem:[%s221] sm:$0xff] %vm629, %v1436
      %1468 = vst.msk [vmem:[%s221 + $0x8] sm:$0xff] %vm629, %v1438
      %1469 = vst.msk [vmem:[%s221 + $0x10] sm:$0xff] %vm629, %v1440
      %1470 = vst.msk [vmem:[%s221 + $0x18] sm:$0xff] %vm629, %v1442
      %1471 = vst.msk [vmem:[%s221 + $0x20] sm:$0xff] %vm629, %v1444
      %1472 = vst.msk [vmem:[%s221 + $0x28] sm:$0xff] %vm629, %v1446
      %1473 = vst.msk [vmem:[%s221 + $0x30] sm:$0xff] %vm629, %v1448
      %1474 = vst.msk [vmem:[%s221 + $0x38] sm:$0xff] %vm629, %v1450
      %1475 = vst.msk [vmem:[%s221 + $0x40] sm:$0xff] %vm629, %v1452
      %1476 = vst.msk [vmem:[%s221 + $0x48] sm:$0xff] %vm629, %v1454
      %1477 = vst.msk [vmem:[%s221 + $0x50] sm:$0xff] %vm629, %v1456
      %1478 = vst.msk [vmem:[%s221 + $0x58] sm:$0xff] %vm629, %v1458
      %1479 = vst.msk [vmem:[%s221 + $0x60] sm:$0xff] %vm629, %v1460
      %1480 = vst.msk [vmem:[%s221 + $0x68] sm:$0xff] %vm629, %v1462
      %1481 = vst.msk [vmem:[%s221 + $0x70] sm:$0xff] %vm629, %v1464
      %1482 = vst.msk [vmem:[%s221 + $0x78] sm:$0xff] %vm629, %v1466
      %s1483 = smul.u32 16, %s15
      %p1484 = scmp.lt.s32.totalorder %s1483, 31
      %s1485 = scalar_select %p1484, %s1483, 31
      %s1486 = smul.addr %s1485, 8
      %s1487 = scalar_lea.vmem %s4, %s1486
      // Predicated region
      $region37: #{forward.1} parent=35 // pred_check
        %p1488 = pneg %p127
      $region38: #{forward.1} parent=35 // pred_check_branch
        %1490 = sbr.rel (%p1488) target = $region40
      $region39: #{forward.1} parent=35 // pred_region
        %s1491 = smul.u32 16, %s15
      $region40: #{forward.1} parent=35 // pred_fallthru
        _
    $region36: #{forward.1} parent=5 // pred_fallthru
      _
    %p1492 = scmp.le.s32.totalorder 2, %s10
    // Predicated region
    $region41: #{forward.1} parent=5 // pred_check
      %p1493 = pneg %p1492
    $region42: #{forward.1} parent=5 // pred_check_branch
      %1495 = sbr.rel (%p1493) target = $region44
    $region43: #{forward.1} parent=5 // pred_region
      %s1496 = ssub.s32 %s10, 2
      // Predicated region
      $region45: #{forward.1} parent=43 // pred_check
        %p1497 = pneg %p133
      $region46: #{forward.1} parent=43 // pred_check_branch
        %1499 = sbr.rel (%p1497) target = $region48
      $region47: #{forward.1} parent=43 // pred_region
        %s1500 = smul.u32 16, %s16
        %p1501 = scmp.lt.s32.totalorder %s1500, 31
        %s1502 = scalar_select %p1501, %s1500, 31
        %s1503 = smul.addr %s1502, 8
        %s1504 = scalar_lea.vmem %s4, %s1503
      $region48: #{forward.1} parent=43 // pred_fallthru
        _
    $region44: #{forward.1} parent=5 // pred_fallthru
      _
  $region6: #{forward.1} parent=0 // loop_footer
    %s14 = sadd.s32 1, %s10
  $region7: #{forward.1} parent=0 // loop_footer_branch
    %9 = sbr.rel target = $region3
  $region8: #{forward.1} parent=0 // loop_exit
    _

</llo_original>
